<compile_context>
chip_gen: v5e
topology: v5e:2x2
jax: 0.10.0
libtpu: 0.0.40
codegen_flags: <defaults>
</compile_context>

<pallas_src>
import jax
import jax.numpy as jnp
from jax.experimental import pallas as pl
from jax.experimental.pallas import tpu as pltpu

NUM_FEATURES = 512
NUM_LABELVEC = 300
NUM_LATENT = 512
NUM_RELATIONS = 71
D_IN = NUM_FEATURES + 2 * NUM_LABELVEC + 8   # 1120 (divisible by 8)
N_OUT_PAD = 128                              # lane-dense output (71 -> 128)
MAX_TB = 1024                                # max batch rows per grid step


def _cdiv(a, b):
    return (a + b - 1) // b


def _round_up(n, m):
    return _cdiv(n, m) * m


def _mlp_kernel(x_ref, w1_ref, b1_ref, w2_ref, b2_ref, o_ref):
    # x arrives as f32 straight from HBM; cast to bf16 in-kernel (VALU work
    # that hides under the MXU) instead of a separate XLA pad/cast pass.
    x_bf16 = x_ref[...].astype(jnp.bfloat16)
    # Linear 1: bf16 @ bf16 on the MXU, f32 accumulation (K = 1120).
    h = jnp.dot(x_bf16, w1_ref[...], preferred_element_type=jnp.float32)
    # Bias + ReLU in f32 on the VPU (b1_ref is (1, 512), broadcasts over rows).
    h = jnp.maximum(h + b1_ref[...], 0.0)
    # Linear 2: lane-dense N = 128 (w2/b2 zero-padded 71 -> 128, once, offline).
    out = jnp.dot(h.astype(jnp.bfloat16), w2_ref[...],
                  preferred_element_type=jnp.float32)
    o_ref[...] = (out + b2_ref[...]).astype(o_ref.dtype)


def prepare_relation_pred_params(w1, b1, w2, b2):
    """One-time weight/bias prep (cast + lane padding). Reuse across calls."""
    w1_p = w1.astype(jnp.bfloat16)                         # (1120, 512), K stays 1120
    b1_p = b1.reshape(1, NUM_LATENT).astype(jnp.float32)   # (1, 512)
    w2_p = jnp.zeros((NUM_LATENT, N_OUT_PAD), jnp.bfloat16)
    w2_p = w2_p.at[:, :NUM_RELATIONS].set(w2.astype(jnp.bfloat16))
    b2_p = jnp.zeros((1, N_OUT_PAD), jnp.float32)
    b2_p = b2_p.at[0, :NUM_RELATIONS].set(b2.astype(jnp.float32))
    return w1_p, b1_p, w2_p, b2_p


@jax.jit
def relation_pred_forward(x, w1_p, b1_p, w2_p, b2_p):
    """x: (B, 1120) f32; prepared params from prepare_relation_pred_params."""
    B = x.shape[0]
    x = x.astype(jnp.float32)

    # Balanced batch tiles: >= 2 grid steps whenever B allows it (so the
    # "parallel" axis shards across both v7x TensorCores), each tile a multiple
    # of 8 rows and <= MAX_TB; the boundary tile wastes < 8 rows (Pallas masks
    # the out-of-bounds rows of the last block, no wrapper-side batch padding).
    n_tiles = max(2, _cdiv(B, MAX_TB))
    tb = max(8, min(_round_up(_cdiv(B, n_tiles), 8), MAX_TB))
    grid = (_cdiv(B, tb),)

    weight_bytes = (w1_p.size * 2 + w2_p.size * 2 + b1_p.size * 4 + b2_p.size * 4)
    vmem_limit = (2 * tb * D_IN * 4            # double-buffered x tiles (f32)
                  + 2 * tb * N_OUT_PAD * 4     # double-buffered out tiles (f32)
                  + 2 * weight_bytes           # VMEM-resident weights (+pipeline copy)
                  + tb * NUM_LATENT * (4 + 2)  # f32 + bf16 intermediate h
                  + (4 << 20))                 # slack
    vmem_limit = int(min(vmem_limit, 96 * 1024 * 1024))

    flops = 2 * B * (D_IN * NUM_LATENT + NUM_LATENT * N_OUT_PAD)
    bytes_accessed = (B * D_IN * 4 + weight_bytes + B * N_OUT_PAD * 4)

    out_padded = pl.pallas_call(
        _mlp_kernel,
        out_shape=jax.ShapeDtypeStruct((B, N_OUT_PAD), jnp.float32),
        grid_spec=pltpu.PrefetchScalarGridSpec(
            num_scalar_prefetch=0,
            grid=grid,
            in_specs=[
                # x: one (tb, 1120) f32 tile per grid step (pipelined DMA).
                pl.BlockSpec((tb, D_IN), lambda i: (i, 0)),
                # Weights / biases: constant index_map -> fetched once, VMEM-resident.
                pl.BlockSpec((D_IN, NUM_LATENT), lambda i: (0, 0)),
                pl.BlockSpec((1, NUM_LATENT), lambda i: (0, 0)),
                pl.BlockSpec((NUM_LATENT, N_OUT_PAD), lambda i: (0, 0)),
                pl.BlockSpec((1, N_OUT_PAD), lambda i: (0, 0)),
            ],
            out_specs=pl.BlockSpec((tb, N_OUT_PAD), lambda i: (i, 0)),
        ),
        compiler_params=pltpu.CompilerParams(
            dimension_semantics=("parallel",),
            vmem_limit_bytes=vmem_limit),
        cost_estimate=pl.CostEstimate(
            flops=flops, transcendentals=0, bytes_accessed=bytes_accessed),
    )(x, w1_p, b1_p, w2_p, b2_p)

    # Slice back to the logical (B, 71) result. (If the downstream consumer can
    # read the lane-padded (B, 128) slab directly, skip this extra pass.)
    return out_padded[:, :NUM_RELATIONS]


def _reference(x, w1, b1, w2, b2):
    h = jnp.maximum(x @ w1 + b1, 0.0)
    return h @ w2 + b2


if __name__ == "__main__":
    key = jax.random.PRNGKey(0)
    k_x, k_w1, k_b1, k_w2, k_b2 = jax.random.split(key, 5)

    B = 8  # small batch of relation-prediction feature vectors
    x = jax.random.normal(k_x, (B, D_IN), dtype=jnp.float32)

    # Deterministic synthetic parameters (PyTorch Linear stores weight as
    # (out, in); we generate directly in (in, out) layout for x @ W).
    w1 = jax.random.normal(k_w1, (D_IN, NUM_LATENT), dtype=jnp.float32) * 0.02
    b1 = jax.random.normal(k_b1, (NUM_LATENT,), dtype=jnp.float32) * 0.02
    w2 = jax.random.normal(k_w2, (NUM_LATENT, NUM_RELATIONS), dtype=jnp.float32) * 0.02
    b2 = jax.random.normal(k_b2, (NUM_RELATIONS,), dtype=jnp.float32) * 0.02

    # One-time parameter prep (cast + 71->128 lane padding), reused per call.
    w1_p, b1_p, w2_p, b2_p = prepare_relation_pred_params(w1, b1, w2, b2)
    w1_p, b1_p, w2_p, b2_p = jax.block_until_ready((w1_p, b1_p, w2_p, b2_p))

    out = relation_pred_forward(x, w1_p, b1_p, w2_p, b2_p)
    out = jax.block_until_ready(out)

    ref = _reference(x, w1, b1, w2, b2)
    assert out.shape == (B, NUM_RELATIONS), out.shape
    # bf16 matmuls with f32 accumulation: loosen tolerance vs the f32 reference.
    assert jnp.allclose(out, ref, atol=5e-2, rtol=5e-2), \
        float(jnp.max(jnp.abs(out - ref)))

    print("KERNEL_OK")
</pallas_src>

<mosaic_0001>
module attributes {stable_mosaic.version = 11 : i64} {
  func.func @_mlp_kernel(%arg0: i32, %arg1: memref<8x1120xf32, #tpu.memory_space<vmem>>, %arg2: memref<1120x512xbf16, #tpu.memory_space<vmem>>, %arg3: memref<1x512xf32, #tpu.memory_space<vmem>>, %arg4: memref<512x128xbf16, #tpu.memory_space<vmem>>, %arg5: memref<1x128xf32, #tpu.memory_space<vmem>>, %arg6: memref<8x128xf32, #tpu.memory_space<vmem>>) attributes {dimension_semantics = [#tpu.dimension_semantics<parallel>], iteration_bounds = array<i64: 1>, scalar_prefetch = 0 : i64, scratch_operands = 0 : i64, tpu.core_type = #tpu.core_type<tc>, window_params = [{transform_indices = @transform_0, window_bounds = array<i64: 8, 1120>}, {pipeline_mode = #tpu.pipeline_mode<synchronous>, transform_indices = @transform_1, window_bounds = array<i64: 1120, 512>}, {pipeline_mode = #tpu.pipeline_mode<synchronous>, transform_indices = @transform_2, window_bounds = array<i64: 1, 512>}, {pipeline_mode = #tpu.pipeline_mode<synchronous>, transform_indices = @transform_3, window_bounds = array<i64: 512, 128>}, {pipeline_mode = #tpu.pipeline_mode<synchronous>, transform_indices = @transform_4, window_bounds = array<i64: 1, 128>}, {transform_indices = @transform_5, window_bounds = array<i64: 8, 128>}]} {
    %c0 = arith.constant 0 : index
    %c0_0 = arith.constant 0 : index
    %0 = vector.load %arg1[%c0, %c0_0] : memref<8x1120xf32, #tpu.memory_space<vmem>>, vector<8x1120xf32>
    %1 = arith.truncf %0 : vector<8x1120xf32> to vector<8x1120xbf16>
    %c0_1 = arith.constant 0 : index
    %c0_2 = arith.constant 0 : index
    %2 = vector.load %arg2[%c0_1, %c0_2] : memref<1120x512xbf16, #tpu.memory_space<vmem>>, vector<1120x512xbf16>
    %cst = arith.constant dense<0.000000e+00> : vector<8x512xf32>
    %3 = tpu.matmul %1, %2, %cst {dimension_numbers = #tpu.dot_dimension_numbers<[1], [0], [0], [1], [0, 0, 1, 1], [], []>} : vector<8x1120xbf16>, vector<1120x512xbf16>, vector<8x512xf32> -> vector<8x512xf32>
    %c0_3 = arith.constant 0 : index
    %c0_4 = arith.constant 0 : index
    %4 = vector.load %arg3[%c0_3, %c0_4] : memref<1x512xf32, #tpu.memory_space<vmem>>, vector<1x512xf32>
    %5 = vector.broadcast %4 : vector<1x512xf32> to vector<8x512xf32>
    %6 = arith.addf %3, %5 : vector<8x512xf32>
    %cst_5 = arith.constant 0.000000e+00 : f32
    %7 = vector.broadcast %cst_5 : f32 to vector<8x512xf32>
    %8 = arith.maximumf %6, %7 : vector<8x512xf32>
    %9 = arith.truncf %8 : vector<8x512xf32> to vector<8x512xbf16>
    %c0_6 = arith.constant 0 : index
    %c0_7 = arith.constant 0 : index
    %10 = vector.load %arg4[%c0_6, %c0_7] : memref<512x128xbf16, #tpu.memory_space<vmem>>, vector<512x128xbf16>
    %cst_8 = arith.constant dense<0.000000e+00> : vector<8x128xf32>
    %11 = tpu.matmul %9, %10, %cst_8 {dimension_numbers = #tpu.dot_dimension_numbers<[1], [0], [0], [1], [0, 0, 1, 1], [], []>} : vector<8x512xbf16>, vector<512x128xbf16>, vector<8x128xf32> -> vector<8x128xf32>
    %c0_9 = arith.constant 0 : index
    %c0_10 = arith.constant 0 : index
    %12 = vector.load %arg5[%c0_9, %c0_10] : memref<1x128xf32, #tpu.memory_space<vmem>>, vector<1x128xf32>
    %13 = vector.broadcast %12 : vector<1x128xf32> to vector<8x128xf32>
    %14 = arith.addf %11, %13 : vector<8x128xf32>
    %c0_11 = arith.constant 0 : index
    %c0_12 = arith.constant 0 : index
    %15 = vector.load %arg6[%c0_11, %c0_12] : memref<8x128xf32, #tpu.memory_space<vmem>>, vector<8x128xf32>
    tpu.vector_store %arg6[%c0_11, %c0_12], %14 {strides = array<i32>} : memref<8x128xf32, #tpu.memory_space<vmem>>, vector<8x128xf32>,
    return
  }
  func.func @transform_0(%arg0: i32) -> (i32, i32) {
    %c0_i32 = arith.constant 0 : i32
    %c0_i32_0 = arith.constant 0 : i32
    return %arg0, %c0_i32 : i32, i32
  }
  func.func @transform_1(%arg0: i32) -> (i32, i32) {
    %c0_i32 = arith.constant 0 : i32
    %c0_i32_0 = arith.constant 0 : i32
    %c0_i32_1 = arith.constant 0 : i32
    return %c0_i32, %c0_i32_0 : i32, i32
  }
  func.func @transform_2(%arg0: i32) -> (i32, i32) {
    %c0_i32 = arith.constant 0 : i32
    %c0_i32_0 = arith.constant 0 : i32
    %c0_i32_1 = arith.constant 0 : i32
    return %c0_i32, %c0_i32_0 : i32, i32
  }
  func.func @transform_3(%arg0: i32) -> (i32, i32) {
    %c0_i32 = arith.constant 0 : i32
    %c0_i32_0 = arith.constant 0 : i32
    %c0_i32_1 = arith.constant 0 : i32
    return %c0_i32, %c0_i32_0 : i32, i32
  }
  func.func @transform_4(%arg0: i32) -> (i32, i32) {
    %c0_i32 = arith.constant 0 : i32
    %c0_i32_0 = arith.constant 0 : i32
    %c0_i32_1 = arith.constant 0 : i32
    return %c0_i32, %c0_i32_0 : i32, i32
  }
  func.func @transform_5(%arg0: i32) -> (i32, i32) {
    %c0_i32 = arith.constant 0 : i32
    %c0_i32_0 = arith.constant 0 : i32
    return %arg0, %c0_i32 : i32, i32
  }
}

</mosaic_0001>

<llo_original>
// kernel: relation_pred_forward.1
$region0: #{relation_pred_forward.1}
  #allocation0 [shape = 'u32[]', space=smem, size = 0x4, offset = 0x4, fixed_abs, tag = 'smem constant byte address 0x4 - core index']
  #allocation1 [shape = 'u32[72,128]{1,0:T(1,128)}', space=vmem, size = 0x9000, scoped, tag = 'internal scratch']
  %s0 = inlined_call_operand.hbm [shape: f32[8,1120], index: 0, kind: input, shape index: {}]
  %s1 = inlined_call_operand.hbm [shape: bf16[1120,512], index: 1, kind: input, shape index: {}]
  %s2 = inlined_call_operand.hbm [shape: f32[1,512], index: 2, kind: input, shape index: {}]
  %s3 = inlined_call_operand.hbm [shape: bf16[512,128], index: 3, kind: input, shape index: {}]
  %s4 = inlined_call_operand.hbm [shape: f32[1,128], index: 4, kind: input, shape index: {}]
  %s5 = inlined_call_operand.hbm [shape: f32[8,128], index: 5, kind: output, shape index: {}]
  %s6 = sld [smem:[#allocation0]]
  $region50: #{relation_pred_forward.1} parent=0
    _
  %s8 = ssub.s32 1, %s6
  %s9 = scalar_select 0, %s8, %s6
  $region1: #{relation_pred_forward.1} parent=0
    #allocation2 [shape = 'u8[36864]{0}', space=vmem, size = 0x9000, scoped, tag = 'input window, operand 0, single buffered']
    #allocation3 [shape = 's32[1]{0}', space=sflag, size = 0x4, scoped, tag = 'scoped memory for relation_pred_forward.1']
    #allocation4 [shape = 's32[1]{0}', space=sflag, size = 0x4, scoped, tag = 'scoped memory for relation_pred_forward.1']
    #allocation5 [shape = 'u8[1146880]{0}', space=vmem, size = 0x118000, scoped, tag = 'input window, operand 1, single buffered']
    #allocation6 [shape = 's32[1]{0}', space=sflag, size = 0x4, scoped, tag = 'scoped memory for relation_pred_forward.1']
    #allocation7 [shape = 'u8[2048]{0}', space=vmem, size = 0x800, scoped, tag = 'input window, operand 2, single buffered']
    #allocation8 [shape = 'u8[131072]{0}', space=vmem, size = 0x20000, scoped, tag = 'input window, operand 3, single buffered']
    #allocation9 [shape = 's32[1]{0}', space=sflag, size = 0x4, scoped, tag = 'scoped memory for relation_pred_forward.1']
    #allocation10 [shape = 'u8[512]{0}', space=vmem, size = 0x400, scoped, tag = 'input window, operand 4, single buffered']
    #allocation11 [shape = 'u8[4096]{0}', space=vmem, size = 0x1000, scoped, tag = 'output window, operand 0, single buffered']
    %10 = vsyncpa [#allocation3], 0
    %11 = vsyncpa [#allocation6], 0
    %12 = vsyncpa [#allocation9], 0
    %13 = vsyncpa [#allocation4], 0
    // Predicated region
    $region2: #{relation_pred_forward.1} parent=1 // pred_check
      _
    $region3: #{relation_pred_forward.1} parent=1 // pred_check_branch
      %15 = sbr.rel (0) target = $region5
    $region4: #{relation_pred_forward.1} parent=1 // pred_region
      %17 = vsyncadd [#allocation3], 0
      %s19 = sshll.u32 %s0, 4
      %s20 = int_to_ptr.hbm [resolvable:$true] %s19
      %s21 = sshll.u32 [#allocation2], 4
      %s22 = int_to_ptr.vmem [resolvable:$true] %s21
      %24 = dma.hbm_to_vmem [thread:$0]  %s20, 1152, %s22, [#allocation3]
    $region5: #{relation_pred_forward.1} parent=1 // pred_fallthru
      _
    // Predicated region
    $region6: #{relation_pred_forward.1} parent=1 // pred_check
      _
    $region7: #{relation_pred_forward.1} parent=1 // pred_check_branch
      %26 = sbr.rel (0) target = $region9
    $region8: #{relation_pred_forward.1} parent=1 // pred_region
      %28 = vsyncadd [#allocation6], 0
      %s29 = sshll.u32 %s1, 4
      %s30 = int_to_ptr.hbm [resolvable:$true] %s29
      %s31 = sshll.u32 [#allocation5], 4
      %s32 = int_to_ptr.vmem [resolvable:$true] %s31
      %37 = dma.hbm_to_vmem [thread:$0]  %s30, 35840, %s32, [#allocation6], 256, 256, 16
    $region9: #{relation_pred_forward.1} parent=1 // pred_fallthru
      _
    // Predicated region
    $region10: #{relation_pred_forward.1} parent=1 // pred_check
      _
    $region11: #{relation_pred_forward.1} parent=1 // pred_check_branch
      %39 = sbr.rel (0) target = $region13
    $region12: #{relation_pred_forward.1} parent=1 // pred_region
      %41 = vsyncadd [#allocation6], 0
      %s43 = sshll.u32 %s2, 4
      %s44 = int_to_ptr.hbm [resolvable:$true] %s43
      %s45 = sshll.u32 [#allocation7], 4
      %s46 = int_to_ptr.vmem [resolvable:$true] %s45
      %48 = dma.hbm_to_vmem [thread:$0]  %s44, 64, %s46, [#allocation6]
    $region13: #{relation_pred_forward.1} parent=1 // pred_fallthru
      _
    // Predicated region
    $region14: #{relation_pred_forward.1} parent=1 // pred_check
      _
    $region15: #{relation_pred_forward.1} parent=1 // pred_check_branch
      %50 = sbr.rel (0) target = $region17
    $region16: #{relation_pred_forward.1} parent=1 // pred_region
      %52 = vsyncadd [#allocation9], 0
      %s53 = sshll.u32 %s3, 4
      %s54 = int_to_ptr.hbm [resolvable:$true] %s53
      %s55 = sshll.u32 [#allocation8], 4
      %s56 = int_to_ptr.vmem [resolvable:$true] %s55
      %61 = dma.hbm_to_vmem [thread:$0]  %s54, 4096, %s56, [#allocation9], 64, 64, 4
    $region17: #{relation_pred_forward.1} parent=1 // pred_fallthru
      _
    // Predicated region
    $region18: #{relation_pred_forward.1} parent=1 // pred_check
      _
    $region19: #{relation_pred_forward.1} parent=1 // pred_check_branch
      %63 = sbr.rel (0) target = $region21
    $region20: #{relation_pred_forward.1} parent=1 // pred_region
      %65 = vsyncadd [#allocation9], 0
      %s67 = sshll.u32 %s4, 4
      %s68 = int_to_ptr.hbm [resolvable:$true] %s67
      %s69 = sshll.u32 [#allocation10], 4
      %s70 = int_to_ptr.vmem [resolvable:$true] %s69
      %72 = dma.hbm_to_vmem [thread:$0]  %s68, 16, %s70, [#allocation9]
    $region21: #{relation_pred_forward.1} parent=1 // pred_fallthru
      _
    // Predicated region
    $region22: #{relation_pred_forward.1} parent=1 // pred_check
      _
    $region23: #{relation_pred_forward.1} parent=1 // pred_check_branch
      %74 = sbr.rel (0) target = $region25
    $region24: #{relation_pred_forward.1} parent=1 // pred_region
      %76 = dma.done [#allocation3], 1152
    $region25: #{relation_pred_forward.1} parent=1 // pred_fallthru
      _
    // Predicated region
    $region26: #{relation_pred_forward.1} parent=1 // pred_check
      _
    $region27: #{relation_pred_forward.1} parent=1 // pred_check_branch
      %78 = sbr.rel (0) target = $region29
    $region28: #{relation_pred_forward.1} parent=1 // pred_region
      %80 = dma.done [#allocation6], 35840
    $region29: #{relation_pred_forward.1} parent=1 // pred_fallthru
      _
    // Predicated region
    $region30: #{relation_pred_forward.1} parent=1 // pred_check
      _
    $region31: #{relation_pred_forward.1} parent=1 // pred_check_branch
      %82 = sbr.rel (0) target = $region33
    $region32: #{relation_pred_forward.1} parent=1 // pred_region
      %84 = dma.done [#allocation6], 64
    $region33: #{relation_pred_forward.1} parent=1 // pred_fallthru
      _
    // Predicated region
    $region34: #{relation_pred_forward.1} parent=1 // pred_check
      _
    $region35: #{relation_pred_forward.1} parent=1 // pred_check_branch
      %86 = sbr.rel (0) target = $region37
    $region36: #{relation_pred_forward.1} parent=1 // pred_region
      %88 = dma.done [#allocation9], 4096
    $region37: #{relation_pred_forward.1} parent=1 // pred_fallthru
      _
    // Predicated region
    $region38: #{relation_pred_forward.1} parent=1 // pred_check
      _
    $region39: #{relation_pred_forward.1} parent=1 // pred_check_branch
      %90 = sbr.rel (0) target = $region41
    $region40: #{relation_pred_forward.1} parent=1 // pred_region
      %92 = dma.done [#allocation9], 16
    $region41: #{relation_pred_forward.1} parent=1 // pred_fallthru
      _
    %v94 = vld [vmem:[#allocation2] sm:$0xff]
    %v95 = vld [vmem:[#allocation2 + $0x8] sm:$0xff]
    %v96 = vld [vmem:[#allocation2 + $0x10] sm:$0xff]
    %v97 = vld [vmem:[#allocation2 + $0x18] sm:$0xff]
    %v98 = vld [vmem:[#allocation2 + $0x20] sm:$0xff]
    %v99 = vld [vmem:[#allocation2 + $0x28] sm:$0xff]
    %v100 = vld [vmem:[#allocation2 + $0x30] sm:$0xff]
    %v101 = vld [vmem:[#allocation2 + $0x38] sm:$0xff]
    %v102 = vld [vmem:[#allocation2 + $0x40] sm:$0xff]
    %v103 = vpack.c.bf16 %v94, %v94
    %v104 = vpack.c.bf16 %v95, %v95
    %v105 = vpack.c.bf16 %v96, %v96
    %v106 = vpack.c.bf16 %v97, %v97
    %v107 = vpack.c.bf16 %v98, %v98
    %v108 = vpack.c.bf16 %v99, %v99
    %v109 = vpack.c.bf16 %v100, %v100
    %v110 = vpack.c.bf16 %v101, %v101
    %v111 = vpack.c.bf16 %v102, %v102
    %v112 = vld [vmem:[#allocation5] sm:$0xff]
    %v113 = vld [vmem:[#allocation5 + $0x8] sm:$0xff]
    %v114 = vld [vmem:[#allocation5 + $0x10] sm:$0xff]
    %v115 = vld [vmem:[#allocation5 + $0x18] sm:$0xff]
    %v116 = vld [vmem:[#allocation5 + $0x20] sm:$0xff]
    %v117 = vld [vmem:[#allocation5 + $0x28] sm:$0xff]
    %v118 = vld [vmem:[#allocation5 + $0x30] sm:$0xff]
    %v119 = vld [vmem:[#allocation5 + $0x38] sm:$0xff]
    %v120 = vld [vmem:[#allocation5 + $0x40] sm:$0xff]
    %v121 = vld [vmem:[#allocation5 + $0x48] sm:$0xff]
    %v122 = vld [vmem:[#allocation5 + $0x50] sm:$0xff]
    %v123 = vld [vmem:[#allocation5 + $0x58] sm:$0xff]
    %v124 = vld [vmem:[#allocation5 + $0x60] sm:$0xff]
    %v125 = vld [vmem:[#allocation5 + $0x68] sm:$0xff]
    %v126 = vld [vmem:[#allocation5 + $0x70] sm:$0xff]
    %v127 = vld [vmem:[#allocation5 + $0x78] sm:$0xff]
    %v128 = vld [vmem:[#allocation5 + $0x80] sm:$0xff]
    %v129 = vld [vmem:[#allocation5 + $0x88] sm:$0xff]
    %v130 = vld [vmem:[#allocation5 + $0x90] sm:$0xff]
    %v131 = vld [vmem:[#allocation5 + $0x98] sm:$0xff]
    %v132 = vld [vmem:[#allocation5 + $0xa0] sm:$0xff]
    %v133 = vld [vmem:[#allocation5 + $0xa8] sm:$0xff]
    %v134 = vld [vmem:[#allocation5 + $0xb0] sm:$0xff]
    %v135 = vld [vmem:[#allocation5 + $0xb8] sm:$0xff]
    %v136 = vld [vmem:[#allocation5 + $0xc0] sm:$0xff]
    %v137 = vld [vmem:[#allocation5 + $0xc8] sm:$0xff]
    %v138 = vld [vmem:[#allocation5 + $0xd0] sm:$0xff]
    %v139 = vld [vmem:[#allocation5 + $0xd8] sm:$0xff]
    %v140 = vld [vmem:[#allocation5 + $0xe0] sm:$0xff]
    %v141 = vld [vmem:[#allocation5 + $0xe8] sm:$0xff]
    %v142 = vld [vmem:[#allocation5 + $0xf0] sm:$0xff]
    %v143 = vld [vmem:[#allocation5 + $0xf8] sm:$0xff]
    %v144 = vld [vmem:[#allocation5 + $0x100] sm:$0xff]
    %v145 = vld [vmem:[#allocation5 + $0x108] sm:$0xff]
    %v146 = vld [vmem:[#allocation5 + $0x110] sm:$0xff]
    %v147 = vld [vmem:[#allocation5 + $0x118] sm:$0xff]
    %v148 = vld [vmem:[#allocation5 + $0x120] sm:$0xff]
    %v149 = vld [vmem:[#allocation5 + $0x128] sm:$0xff]
    %v150 = vld [vmem:[#allocation5 + $0x130] sm:$0xff]
    %v151 = vld [vmem:[#allocation5 + $0x138] sm:$0xff]
    %v152 = vld [vmem:[#allocation5 + $0x140] sm:$0xff]
    %v153 = vld [vmem:[#allocation5 + $0x148] sm:$0xff]
    %v154 = vld [vmem:[#allocation5 + $0x150] sm:$0xff]
    %v155 = vld [vmem:[#allocation5 + $0x158] sm:$0xff]
    %v156 = vld [vmem:[#allocation5 + $0x160] sm:$0xff]
    %v157 = vld [vmem:[#allocation5 + $0x168] sm:$0xff]
    %v158 = vld [vmem:[#allocation5 + $0x170] sm:$0xff]
    %v159 = vld [vmem:[#allocation5 + $0x178] sm:$0xff]
    %v160 = vld [vmem:[#allocation5 + $0x180] sm:$0xff]
    %v161 = vld [vmem:[#allocation5 + $0x188] sm:$0xff]
    %v162 = vld [vmem:[#allocation5 + $0x190] sm:$0xff]
    %v163 = vld [vmem:[#allocation5 + $0x198] sm:$0xff]
    %v164 = vld [vmem:[#allocation5 + $0x1a0] sm:$0xff]
    %v165 = vld [vmem:[#allocation5 + $0x1a8] sm:$0xff]
    %v166 = vld [vmem:[#allocation5 + $0x1b0] sm:$0xff]
    %v167 = vld [vmem:[#allocation5 + $0x1b8] sm:$0xff]
    %v168 = vld [vmem:[#allocation5 + $0x1c0] sm:$0xff]
    %v169 = vld [vmem:[#allocation5 + $0x1c8] sm:$0xff]
    %v170 = vld [vmem:[#allocation5 + $0x1d0] sm:$0xff]
    %v171 = vld [vmem:[#allocation5 + $0x1d8] sm:$0xff]
    %v172 = vld [vmem:[#allocation5 + $0x1e0] sm:$0xff]
    %v173 = vld [vmem:[#allocation5 + $0x1e8] sm:$0xff]
    %v174 = vld [vmem:[#allocation5 + $0x1f0] sm:$0xff]
    %v175 = vld [vmem:[#allocation5 + $0x1f8] sm:$0xff]
    %v176 = vld [vmem:[#allocation5 + $0x200] sm:$0xff]
    %v177 = vld [vmem:[#allocation5 + $0x208] sm:$0xff]
    %v178 = vld [vmem:[#allocation5 + $0x210] sm:$0xff]
    %v179 = vld [vmem:[#allocation5 + $0x218] sm:$0xff]
    %v180 = vld [vmem:[#allocation5 + $0x220] sm:$0xff]
    %v181 = vld [vmem:[#allocation5 + $0x228] sm:$0xff]
    %v182 = vld [vmem:[#allocation5 + $0x230] sm:$0xff]
    %v183 = vld [vmem:[#allocation5 + $0x238] sm:$0xff]
    %v184 = vld [vmem:[#allocation5 + $0x240] sm:$0xff]
    %v185 = vld [vmem:[#allocation5 + $0x248] sm:$0xff]
    %v186 = vld [vmem:[#allocation5 + $0x250] sm:$0xff]
    %v187 = vld [vmem:[#allocation5 + $0x258] sm:$0xff]
    %v188 = vld [vmem:[#allocation5 + $0x260] sm:$0xff]
    %v189 = vld [vmem:[#allocation5 + $0x268] sm:$0xff]
    %v190 = vld [vmem:[#allocation5 + $0x270] sm:$0xff]
    %v191 = vld [vmem:[#allocation5 + $0x278] sm:$0xff]
    %v192 = vld [vmem:[#allocation5 + $0x280] sm:$0xff]
    %v193 = vld [vmem:[#allocation5 + $0x288] sm:$0xff]
    %v194 = vld [vmem:[#allocation5 + $0x290] sm:$0xff]
    %v195 = vld [vmem:[#allocation5 + $0x298] sm:$0xff]
    %v196 = vld [vmem:[#allocation5 + $0x2a0] sm:$0xff]
    %v197 = vld [vmem:[#allocation5 + $0x2a8] sm:$0xff]
    %v198 = vld [vmem:[#allocation5 + $0x2b0] sm:$0xff]
    %v199 = vld [vmem:[#allocation5 + $0x2b8] sm:$0xff]
    %v200 = vld [vmem:[#allocation5 + $0x2c0] sm:$0xff]
    %v201 = vld [vmem:[#allocation5 + $0x2c8] sm:$0xff]
    %v202 = vld [vmem:[#allocation5 + $0x2d0] sm:$0xff]
    %v203 = vld [vmem:[#allocation5 + $0x2d8] sm:$0xff]
    %v204 = vld [vmem:[#allocation5 + $0x2e0] sm:$0xff]
    %v205 = vld [vmem:[#allocation5 + $0x2e8] sm:$0xff]
    %v206 = vld [vmem:[#allocation5 + $0x2f0] sm:$0xff]
    %v207 = vld [vmem:[#allocation5 + $0x2f8] sm:$0xff]
    %v208 = vld [vmem:[#allocation5 + $0x300] sm:$0xff]
    %v209 = vld [vmem:[#allocation5 + $0x308] sm:$0xff]
    %v210 = vld [vmem:[#allocation5 + $0x310] sm:$0xff]
    %v211 = vld [vmem:[#allocation5 + $0x318] sm:$0xff]
    %v212 = vld [vmem:[#allocation5 + $0x320] sm:$0xff]
    %v213 = vld [vmem:[#allocation5 + $0x328] sm:$0xff]
    %v214 = vld [vmem:[#allocation5 + $0x330] sm:$0xff]
    %v215 = vld [vmem:[#allocation5 + $0x338] sm:$0xff]
    %v216 = vld [vmem:[#allocation5 + $0x340] sm:$0xff]
    %v217 = vld [vmem:[#allocation5 + $0x348] sm:$0xff]
    %v218 = vld [vmem:[#allocation5 + $0x350] sm:$0xff]
    %v219 = vld [vmem:[#allocation5 + $0x358] sm:$0xff]
    %v220 = vld [vmem:[#allocation5 + $0x360] sm:$0xff]
    %v221 = vld [vmem:[#allocation5 + $0x368] sm:$0xff]
    %v222 = vld [vmem:[#allocation5 + $0x370] sm:$0xff]
    %v223 = vld [vmem:[#allocation5 + $0x378] sm:$0xff]
    %v224 = vld [vmem:[#allocation5 + $0x380] sm:$0xff]
    %v225 = vld [vmem:[#allocation5 + $0x388] sm:$0xff]
    %v226 = vld [vmem:[#allocation5 + $0x390] sm:$0xff]
    %v227 = vld [vmem:[#allocation5 + $0x398] sm:$0xff]
    %v228 = vld [vmem:[#allocation5 + $0x3a0] sm:$0xff]
    %v229 = vld [vmem:[#allocation5 + $0x3a8] sm:$0xff]
    %v230 = vld [vmem:[#allocation5 + $0x3b0] sm:$0xff]
    %v231 = vld [vmem:[#allocation5 + $0x3b8] sm:$0xff]
    %v232 = vld [vmem:[#allocation5 + $0x3c0] sm:$0xff]
    %v233 = vld [vmem:[#allocation5 + $0x3c8] sm:$0xff]
    %v234 = vld [vmem:[#allocation5 + $0x3d0] sm:$0xff]
    %v235 = vld [vmem:[#allocation5 + $0x3d8] sm:$0xff]
    %v236 = vld [vmem:[#allocation5 + $0x3e0] sm:$0xff]
    %v237 = vld [vmem:[#allocation5 + $0x3e8] sm:$0xff]
    %v238 = vld [vmem:[#allocation5 + $0x3f0] sm:$0xff]
    %v239 = vld [vmem:[#allocation5 + $0x3f8] sm:$0xff]
    %v240 = vld [vmem:[#allocation5 + $0x400] sm:$0xff]
    %v241 = vld [vmem:[#allocation5 + $0x408] sm:$0xff]
    %v242 = vld [vmem:[#allocation5 + $0x410] sm:$0xff]
    %v243 = vld [vmem:[#allocation5 + $0x418] sm:$0xff]
    %v244 = vld [vmem:[#allocation5 + $0x420] sm:$0xff]
    %v245 = vld [vmem:[#allocation5 + $0x428] sm:$0xff]
    %v246 = vld [vmem:[#allocation5 + $0x430] sm:$0xff]
    %v247 = vld [vmem:[#allocation5 + $0x438] sm:$0xff]
    %v248 = vld [vmem:[#allocation5 + $0x440] sm:$0xff]
    %v249 = vld [vmem:[#allocation5 + $0x448] sm:$0xff]
    %v250 = vld [vmem:[#allocation5 + $0x450] sm:$0xff]
    %v251 = vld [vmem:[#allocation5 + $0x458] sm:$0xff]
    %v252 = vld [vmem:[#allocation5 + $0x460] sm:$0xff]
    %v253 = vld [vmem:[#allocation5 + $0x468] sm:$0xff]
    %v254 = vld [vmem:[#allocation5 + $0x470] sm:$0xff]
    %v255 = vld [vmem:[#allocation5 + $0x478] sm:$0xff]
    %v256 = vld [vmem:[#allocation5 + $0x480] sm:$0xff]
    %v257 = vld [vmem:[#allocation5 + $0x488] sm:$0xff]
    %v258 = vld [vmem:[#allocation5 + $0x490] sm:$0xff]
    %v259 = vld [vmem:[#allocation5 + $0x498] sm:$0xff]
    %v260 = vld [vmem:[#allocation5 + $0x4a0] sm:$0xff]
    %v261 = vld [vmem:[#allocation5 + $0x4a8] sm:$0xff]
    %v262 = vld [vmem:[#allocation5 + $0x4b0] sm:$0xff]
    %v263 = vld [vmem:[#allocation5 + $0x4b8] sm:$0xff]
    %v264 = vld [vmem:[#allocation5 + $0x4c0] sm:$0xff]
    %v265 = vld [vmem:[#allocation5 + $0x4c8] sm:$0xff]
    %v266 = vld [vmem:[#allocation5 + $0x4d0] sm:$0xff]
    %v267 = vld [vmem:[#allocation5 + $0x4d8] sm:$0xff]
    %v268 = vld [vmem:[#allocation5 + $0x4e0] sm:$0xff]
    %v269 = vld [vmem:[#allocation5 + $0x4e8] sm:$0xff]
    %v270 = vld [vmem:[#allocation5 + $0x4f0] sm:$0xff]
    %v271 = vld [vmem:[#allocation5 + $0x4f8] sm:$0xff]
    %v272 = vld [vmem:[#allocation5 + $0x500] sm:$0xff]
    %v273 = vld [vmem:[#allocation5 + $0x508] sm:$0xff]
    %v274 = vld [vmem:[#allocation5 + $0x510] sm:$0xff]
    %v275 = vld [vmem:[#allocation5 + $0x518] sm:$0xff]
    %v276 = vld [vmem:[#allocation5 + $0x520] sm:$0xff]
    %v277 = vld [vmem:[#allocation5 + $0x528] sm:$0xff]
    %v278 = vld [vmem:[#allocation5 + $0x530] sm:$0xff]
    %v279 = vld [vmem:[#allocation5 + $0x538] sm:$0xff]
    %v280 = vld [vmem:[#allocation5 + $0x540] sm:$0xff]
    %v281 = vld [vmem:[#allocation5 + $0x548] sm:$0xff]
    %v282 = vld [vmem:[#allocation5 + $0x550] sm:$0xff]
    %v283 = vld [vmem:[#allocation5 + $0x558] sm:$0xff]
    %v284 = vld [vmem:[#allocation5 + $0x560] sm:$0xff]
    %v285 = vld [vmem:[#allocation5 + $0x568] sm:$0xff]
    %v286 = vld [vmem:[#allocation5 + $0x570] sm:$0xff]
    %v287 = vld [vmem:[#allocation5 + $0x578] sm:$0xff]
    %v288 = vld [vmem:[#allocation5 + $0x580] sm:$0xff]
    %v289 = vld [vmem:[#allocation5 + $0x588] sm:$0xff]
    %v290 = vld [vmem:[#allocation5 + $0x590] sm:$0xff]
    %v291 = vld [vmem:[#allocation5 + $0x598] sm:$0xff]
    %v292 = vld [vmem:[#allocation5 + $0x5a0] sm:$0xff]
    %v293 = vld [vmem:[#allocation5 + $0x5a8] sm:$0xff]
    %v294 = vld [vmem:[#allocation5 + $0x5b0] sm:$0xff]
    %v295 = vld [vmem:[#allocation5 + $0x5b8] sm:$0xff]
    %v296 = vld [vmem:[#allocation5 + $0x5c0] sm:$0xff]
    %v297 = vld [vmem:[#allocation5 + $0x5c8] sm:$0xff]
    %v298 = vld [vmem:[#allocation5 + $0x5d0] sm:$0xff]
    %v299 = vld [vmem:[#allocation5 + $0x5d8] sm:$0xff]
    %v300 = vld [vmem:[#allocation5 + $0x5e0] sm:$0xff]
    %v301 = vld [vmem:[#allocation5 + $0x5e8] sm:$0xff]
    %v302 = vld [vmem:[#allocation5 + $0x5f0] sm:$0xff]
    %v303 = vld [vmem:[#allocation5 + $0x5f8] sm:$0xff]
    %v304 = vld [vmem:[#allocation5 + $0x600] sm:$0xff]
    %v305 = vld [vmem:[#allocation5 + $0x608] sm:$0xff]
    %v306 = vld [vmem:[#allocation5 + $0x610] sm:$0xff]
    %v307 = vld [vmem:[#allocation5 + $0x618] sm:$0xff]
    %v308 = vld [vmem:[#allocation5 + $0x620] sm:$0xff]
    %v309 = vld [vmem:[#allocation5 + $0x628] sm:$0xff]
    %v310 = vld [vmem:[#allocation5 + $0x630] sm:$0xff]
    %v311 = vld [vmem:[#allocation5 + $0x638] sm:$0xff]
    %v312 = vld [vmem:[#allocation5 + $0x640] sm:$0xff]
    %v313 = vld [vmem:[#allocation5 + $0x648] sm:$0xff]
    %v314 = vld [vmem:[#allocation5 + $0x650] sm:$0xff]
    %v315 = vld [vmem:[#allocation5 + $0x658] sm:$0xff]
    %v316 = vld [vmem:[#allocation5 + $0x660] sm:$0xff]
    %v317 = vld [vmem:[#allocation5 + $0x668] sm:$0xff]
    %v318 = vld [vmem:[#allocation5 + $0x670] sm:$0xff]
    %v319 = vld [vmem:[#allocation5 + $0x678] sm:$0xff]
    %v320 = vld [vmem:[#allocation5 + $0x680] sm:$0xff]
    %v321 = vld [vmem:[#allocation5 + $0x688] sm:$0xff]
    %v322 = vld [vmem:[#allocation5 + $0x690] sm:$0xff]
    %v323 = vld [vmem:[#allocation5 + $0x698] sm:$0xff]
    %v324 = vld [vmem:[#allocation5 + $0x6a0] sm:$0xff]
    %v325 = vld [vmem:[#allocation5 + $0x6a8] sm:$0xff]
    %v326 = vld [vmem:[#allocation5 + $0x6b0] sm:$0xff]
    %v327 = vld [vmem:[#allocation5 + $0x6b8] sm:$0xff]
    %v328 = vld [vmem:[#allocation5 + $0x6c0] sm:$0xff]
    %v329 = vld [vmem:[#allocation5 + $0x6c8] sm:$0xff]
    %v330 = vld [vmem:[#allocation5 + $0x6d0] sm:$0xff]
    %v331 = vld [vmem:[#allocation5 + $0x6d8] sm:$0xff]
    %v332 = vld [vmem:[#allocation5 + $0x6e0] sm:$0xff]
    %v333 = vld [vmem:[#allocation5 + $0x6e8] sm:$0xff]
    %v334 = vld [vmem:[#allocation5 + $0x6f0] sm:$0xff]
    %v335 = vld [vmem:[#allocation5 + $0x6f8] sm:$0xff]
    %v336 = vld [vmem:[#allocation5 + $0x700] sm:$0xff]
    %v337 = vld [vmem:[#allocation5 + $0x708] sm:$0xff]
    %v338 = vld [vmem:[#allocation5 + $0x710] sm:$0xff]
    %v339 = vld [vmem:[#allocation5 + $0x718] sm:$0xff]
    %v340 = vld [vmem:[#allocation5 + $0x720] sm:$0xff]
    %v341 = vld [vmem:[#allocation5 + $0x728] sm:$0xff]
    %v342 = vld [vmem:[#allocation5 + $0x730] sm:$0xff]
    %v343 = vld [vmem:[#allocation5 + $0x738] sm:$0xff]
    %v344 = vld [vmem:[#allocation5 + $0x740] sm:$0xff]
    %v345 = vld [vmem:[#allocation5 + $0x748] sm:$0xff]
    %v346 = vld [vmem:[#allocation5 + $0x750] sm:$0xff]
    %v347 = vld [vmem:[#allocation5 + $0x758] sm:$0xff]
    %v348 = vld [vmem:[#allocation5 + $0x760] sm:$0xff]
    %v349 = vld [vmem:[#allocation5 + $0x768] sm:$0xff]
    %v350 = vld [vmem:[#allocation5 + $0x770] sm:$0xff]
    %v351 = vld [vmem:[#allocation5 + $0x778] sm:$0xff]
    %v352 = vld [vmem:[#allocation5 + $0x780] sm:$0xff]
    %v353 = vld [vmem:[#allocation5 + $0x788] sm:$0xff]
    %v354 = vld [vmem:[#allocation5 + $0x790] sm:$0xff]
    %v355 = vld [vmem:[#allocation5 + $0x798] sm:$0xff]
    %v356 = vld [vmem:[#allocation5 + $0x7a0] sm:$0xff]
    %v357 = vld [vmem:[#allocation5 + $0x7a8] sm:$0xff]
    %v358 = vld [vmem:[#allocation5 + $0x7b0] sm:$0xff]
    %v359 = vld [vmem:[#allocation5 + $0x7b8] sm:$0xff]
    %v360 = vld [vmem:[#allocation5 + $0x7c0] sm:$0xff]
    %v361 = vld [vmem:[#allocation5 + $0x7c8] sm:$0xff]
    %v362 = vld [vmem:[#allocation5 + $0x7d0] sm:$0xff]
    %v363 = vld [vmem:[#allocation5 + $0x7d8] sm:$0xff]
    %v364 = vld [vmem:[#allocation5 + $0x7e0] sm:$0xff]
    %v365 = vld [vmem:[#allocation5 + $0x7e8] sm:$0xff]
    %v366 = vld [vmem:[#allocation5 + $0x7f0] sm:$0xff]
    %v367 = vld [vmem:[#allocation5 + $0x7f8] sm:$0xff]
    %v368 = vld [vmem:[#allocation5 + $0x800] sm:$0xff]
    %v369 = vld [vmem:[#allocation5 + $0x808] sm:$0xff]
    %v370 = vld [vmem:[#allocation5 + $0x810] sm:$0xff]
    %v371 = vld [vmem:[#allocation5 + $0x818] sm:$0xff]
    %v372 = vld [vmem:[#allocation5 + $0x820] sm:$0xff]
    %v373 = vld [vmem:[#allocation5 + $0x828] sm:$0xff]
    %v374 = vld [vmem:[#allocation5 + $0x830] sm:$0xff]
    %v375 = vld [vmem:[#allocation5 + $0x838] sm:$0xff]
    %v376 = vld [vmem:[#allocation5 + $0x840] sm:$0xff]
    %v377 = vld [vmem:[#allocation5 + $0x848] sm:$0xff]
    %v378 = vld [vmem:[#allocation5 + $0x850] sm:$0xff]
    %v379 = vld [vmem:[#allocation5 + $0x858] sm:$0xff]
    %v380 = vld [vmem:[#allocation5 + $0x860] sm:$0xff]
    %v381 = vld [vmem:[#allocation5 + $0x868] sm:$0xff]
    %v382 = vld [vmem:[#allocation5 + $0x870] sm:$0xff]
    %v383 = vld [vmem:[#allocation5 + $0x878] sm:$0xff]
    %v384 = vld [vmem:[#allocation5 + $0x880] sm:$0xff]
    %v385 = vld [vmem:[#allocation5 + $0x888] sm:$0xff]
    %v386 = vld [vmem:[#allocation5 + $0x890] sm:$0xff]
    %v387 = vld [vmem:[#allocation5 + $0x898] sm:$0xff]
    %v388 = vld [vmem:[#allocation5 + $0x8a0] sm:$0xff]
    %v389 = vld [vmem:[#allocation5 + $0x8a8] sm:$0xff]
    %v390 = vld [vmem:[#allocation5 + $0x8b0] sm:$0xff]
    %v391 = vld [vmem:[#allocation5 + $0x8b8] sm:$0xff]
    %v392 = vld [vmem:[#allocation7] sm:$0xf]
    %v394 = vperm.slane %v392, 0
    %v395 = vperm.slane %v392, 1
    %v396 = vperm.slane %v392, 2
    %v397 = vperm.slane %v392, 3
    %v682 = vunpack.c.l.b16 %v112
    %v683 = vunpack.c.h.b16 %v112
    %v684 = vunpack.c.l.b16 %v113
    %v685 = vunpack.c.h.b16 %v113
    %v686 = vunpack.c.l.b16 %v114
    %v687 = vunpack.c.h.b16 %v114
    %v688 = vunpack.c.l.b16 %v115
    %v689 = vunpack.c.h.b16 %v115
    %v690 = vunpack.c.l.b16 %v116
    %v691 = vunpack.c.h.b16 %v116
    %v692 = vunpack.c.l.b16 %v117
    %v693 = vunpack.c.h.b16 %v117
    %v694 = vunpack.c.l.b16 %v118
    %v695 = vunpack.c.h.b16 %v118
    %v696 = vunpack.c.l.b16 %v119
    %v697 = vunpack.c.h.b16 %v119
    %v698 = vunpack.c.l.b16 %v120
    %v699 = vunpack.c.h.b16 %v120
    %v700 = vunpack.c.l.b16 %v121
    %v701 = vunpack.c.h.b16 %v121
    %v702 = vunpack.c.l.b16 %v122
    %v703 = vunpack.c.h.b16 %v122
    %v704 = vunpack.c.l.b16 %v123
    %v705 = vunpack.c.h.b16 %v123
    %v706 = vunpack.c.l.b16 %v124
    %v707 = vunpack.c.h.b16 %v124
    %v708 = vunpack.c.l.b16 %v125
    %v709 = vunpack.c.h.b16 %v125
    %v710 = vunpack.c.l.b16 %v126
    %v711 = vunpack.c.h.b16 %v126
    %v712 = vunpack.c.l.b16 %v127
    %v713 = vunpack.c.h.b16 %v127
    %v714 = vunpack.c.l.b16 %v128
    %v715 = vunpack.c.h.b16 %v128
    %v716 = vunpack.c.l.b16 %v129
    %v717 = vunpack.c.h.b16 %v129
    %v718 = vunpack.c.l.b16 %v130
    %v719 = vunpack.c.h.b16 %v130
    %v720 = vunpack.c.l.b16 %v131
    %v721 = vunpack.c.h.b16 %v131
    %v722 = vunpack.c.l.b16 %v132
    %v723 = vunpack.c.h.b16 %v132
    %v724 = vunpack.c.l.b16 %v133
    %v725 = vunpack.c.h.b16 %v133
    %v726 = vunpack.c.l.b16 %v134
    %v727 = vunpack.c.h.b16 %v134
    %v728 = vunpack.c.l.b16 %v135
    %v729 = vunpack.c.h.b16 %v135
    %v730 = vunpack.c.l.b16 %v136
    %v731 = vunpack.c.h.b16 %v136
    %v732 = vunpack.c.l.b16 %v137
    %v733 = vunpack.c.h.b16 %v137
    %v734 = vunpack.c.l.b16 %v138
    %v735 = vunpack.c.h.b16 %v138
    %v736 = vunpack.c.l.b16 %v139
    %v737 = vunpack.c.h.b16 %v139
    %v738 = vunpack.c.l.b16 %v140
    %v739 = vunpack.c.h.b16 %v140
    %v740 = vunpack.c.l.b16 %v141
    %v741 = vunpack.c.h.b16 %v141
    %v742 = vunpack.c.l.b16 %v142
    %v743 = vunpack.c.h.b16 %v142
    %v744 = vunpack.c.l.b16 %v143
    %v745 = vunpack.c.h.b16 %v143
    %v746 = vunpack.c.l.b16 %v144
    %v747 = vunpack.c.h.b16 %v144
    %v748 = vunpack.c.l.b16 %v145
    %v749 = vunpack.c.h.b16 %v145
    %v750 = vunpack.c.l.b16 %v146
    %v751 = vunpack.c.h.b16 %v146
    %v752 = vunpack.c.l.b16 %v147
    %v753 = vunpack.c.h.b16 %v147
    %v754 = vunpack.c.l.b16 %v148
    %v755 = vunpack.c.h.b16 %v148
    %v756 = vunpack.c.l.b16 %v149
    %v757 = vunpack.c.h.b16 %v149
    %v758 = vunpack.c.l.b16 %v150
    %v759 = vunpack.c.h.b16 %v150
    %v760 = vunpack.c.l.b16 %v151
    %v761 = vunpack.c.h.b16 %v151
    %v762 = vunpack.c.l.b16 %v152
    %v763 = vunpack.c.h.b16 %v152
    %v764 = vunpack.c.l.b16 %v153
    %v765 = vunpack.c.h.b16 %v153
    %v766 = vunpack.c.l.b16 %v154
    %v767 = vunpack.c.h.b16 %v154
    %v768 = vunpack.c.l.b16 %v155
    %v769 = vunpack.c.h.b16 %v155
    %v770 = vunpack.c.l.b16 %v156
    %v771 = vunpack.c.h.b16 %v156
    %v772 = vunpack.c.l.b16 %v157
    %v773 = vunpack.c.h.b16 %v157
    %v774 = vunpack.c.l.b16 %v158
    %v775 = vunpack.c.h.b16 %v158
    %v776 = vunpack.c.l.b16 %v159
    %v777 = vunpack.c.h.b16 %v159
    %v778 = vunpack.c.l.b16 %v160
    %v779 = vunpack.c.h.b16 %v160
    %v780 = vunpack.c.l.b16 %v161
    %v781 = vunpack.c.h.b16 %v161
    %v782 = vunpack.c.l.b16 %v162
    %v783 = vunpack.c.h.b16 %v162
    %v784 = vunpack.c.l.b16 %v163
    %v785 = vunpack.c.h.b16 %v163
    %v786 = vunpack.c.l.b16 %v164
    %v787 = vunpack.c.h.b16 %v164
    %v788 = vunpack.c.l.b16 %v165
    %v789 = vunpack.c.h.b16 %v165
    %v790 = vunpack.c.l.b16 %v166
    %v791 = vunpack.c.h.b16 %v166
    %v792 = vunpack.c.l.b16 %v167
    %v793 = vunpack.c.h.b16 %v167
    %v794 = vunpack.c.l.b16 %v168
    %v795 = vunpack.c.h.b16 %v168
    %v796 = vunpack.c.l.b16 %v169
    %v797 = vunpack.c.h.b16 %v169
    %v798 = vunpack.c.l.b16 %v170
    %v799 = vunpack.c.h.b16 %v170
    %v800 = vunpack.c.l.b16 %v171
    %v801 = vunpack.c.h.b16 %v171
    %v802 = vunpack.c.l.b16 %v172
    %v803 = vunpack.c.h.b16 %v172
    %v804 = vunpack.c.l.b16 %v173
    %v805 = vunpack.c.h.b16 %v173
    %v806 = vunpack.c.l.b16 %v174
    %v807 = vunpack.c.h.b16 %v174
    %v808 = vunpack.c.l.b16 %v175
    %v809 = vunpack.c.h.b16 %v175
    %v810 = vunpack.c.l.b16 %v176
    %v811 = vunpack.c.h.b16 %v176
    %v812 = vunpack.c.l.b16 %v177
    %v813 = vunpack.c.h.b16 %v177
    %v814 = vunpack.c.l.b16 %v178
    %v815 = vunpack.c.h.b16 %v178
    %v816 = vunpack.c.l.b16 %v179
    %v817 = vunpack.c.h.b16 %v179
    %v818 = vunpack.c.l.b16 %v180
    %v819 = vunpack.c.h.b16 %v180
    %v820 = vunpack.c.l.b16 %v181
    %v821 = vunpack.c.h.b16 %v181
    %v822 = vunpack.c.l.b16 %v182
    %v823 = vunpack.c.h.b16 %v182
    %v824 = vunpack.c.l.b16 %v183
    %v825 = vunpack.c.h.b16 %v183
    %v826 = vunpack.c.l.b16 %v184
    %v827 = vunpack.c.h.b16 %v184
    %v828 = vunpack.c.l.b16 %v185
    %v829 = vunpack.c.h.b16 %v185
    %v830 = vunpack.c.l.b16 %v186
    %v831 = vunpack.c.h.b16 %v186
    %v832 = vunpack.c.l.b16 %v187
    %v833 = vunpack.c.h.b16 %v187
    %v834 = vunpack.c.l.b16 %v188
    %v835 = vunpack.c.h.b16 %v188
    %v836 = vunpack.c.l.b16 %v189
    %v837 = vunpack.c.h.b16 %v189
    %v838 = vunpack.c.l.b16 %v190
    %v839 = vunpack.c.h.b16 %v190
    %v840 = vunpack.c.l.b16 %v191
    %v841 = vunpack.c.h.b16 %v191
    %v842 = vunpack.c.l.b16 %v192
    %v843 = vunpack.c.h.b16 %v192
    %v844 = vunpack.c.l.b16 %v193
    %v845 = vunpack.c.h.b16 %v193
    %v846 = vunpack.c.l.b16 %v194
    %v847 = vunpack.c.h.b16 %v194
    %v848 = vunpack.c.l.b16 %v195
    %v849 = vunpack.c.h.b16 %v195
    %v850 = vunpack.c.l.b16 %v196
    %v851 = vunpack.c.h.b16 %v196
    %v852 = vunpack.c.l.b16 %v197
    %v853 = vunpack.c.h.b16 %v197
    %v854 = vunpack.c.l.b16 %v198
    %v855 = vunpack.c.h.b16 %v198
    %v856 = vunpack.c.l.b16 %v199
    %v857 = vunpack.c.h.b16 %v199
    %v858 = vunpack.c.l.b16 %v200
    %v859 = vunpack.c.h.b16 %v200
    %v860 = vunpack.c.l.b16 %v201
    %v861 = vunpack.c.h.b16 %v201
    %v862 = vunpack.c.l.b16 %v202
    %v863 = vunpack.c.h.b16 %v202
    %v864 = vunpack.c.l.b16 %v203
    %v865 = vunpack.c.h.b16 %v203
    %v866 = vunpack.c.l.b16 %v204
    %v867 = vunpack.c.h.b16 %v204
    %v868 = vunpack.c.l.b16 %v205
    %v869 = vunpack.c.h.b16 %v205
    %v870 = vunpack.c.l.b16 %v206
    %v871 = vunpack.c.h.b16 %v206
    %v872 = vunpack.c.l.b16 %v207
    %v873 = vunpack.c.h.b16 %v207
    %v874 = vunpack.c.l.b16 %v208
    %v875 = vunpack.c.h.b16 %v208
    %v876 = vunpack.c.l.b16 %v209
    %v877 = vunpack.c.h.b16 %v209
    %v878 = vunpack.c.l.b16 %v210
    %v879 = vunpack.c.h.b16 %v210
    %v880 = vunpack.c.l.b16 %v211
    %v881 = vunpack.c.h.b16 %v211
    %v882 = vunpack.c.l.b16 %v212
    %v883 = vunpack.c.h.b16 %v212
    %v884 = vunpack.c.l.b16 %v213
    %v885 = vunpack.c.h.b16 %v213
    %v886 = vunpack.c.l.b16 %v214
    %v887 = vunpack.c.h.b16 %v214
    %v888 = vunpack.c.l.b16 %v215
    %v889 = vunpack.c.h.b16 %v215
    %v890 = vunpack.c.l.b16 %v216
    %v891 = vunpack.c.h.b16 %v216
    %v892 = vunpack.c.l.b16 %v217
    %v893 = vunpack.c.h.b16 %v217
    %v894 = vunpack.c.l.b16 %v218
    %v895 = vunpack.c.h.b16 %v218
    %v896 = vunpack.c.l.b16 %v219
    %v897 = vunpack.c.h.b16 %v219
    %v898 = vunpack.c.l.b16 %v220
    %v899 = vunpack.c.h.b16 %v220
    %v900 = vunpack.c.l.b16 %v221
    %v901 = vunpack.c.h.b16 %v221
    %v902 = vunpack.c.l.b16 %v222
    %v903 = vunpack.c.h.b16 %v222
    %v904 = vunpack.c.l.b16 %v223
    %v905 = vunpack.c.h.b16 %v223
    %v906 = vunpack.c.l.b16 %v224
    %v907 = vunpack.c.h.b16 %v224
    %v908 = vunpack.c.l.b16 %v225
    %v909 = vunpack.c.h.b16 %v225
    %v910 = vunpack.c.l.b16 %v226
    %v911 = vunpack.c.h.b16 %v226
    %v912 = vunpack.c.l.b16 %v227
    %v913 = vunpack.c.h.b16 %v227
    %v914 = vunpack.c.l.b16 %v228
    %v915 = vunpack.c.h.b16 %v228
    %v916 = vunpack.c.l.b16 %v229
    %v917 = vunpack.c.h.b16 %v229
    %v918 = vunpack.c.l.b16 %v230
    %v919 = vunpack.c.h.b16 %v230
    %v920 = vunpack.c.l.b16 %v231
    %v921 = vunpack.c.h.b16 %v231
    %v922 = vunpack.c.l.b16 %v232
    %v923 = vunpack.c.h.b16 %v232
    %v924 = vunpack.c.l.b16 %v233
    %v925 = vunpack.c.h.b16 %v233
    %v926 = vunpack.c.l.b16 %v234
    %v927 = vunpack.c.h.b16 %v234
    %v928 = vunpack.c.l.b16 %v235
    %v929 = vunpack.c.h.b16 %v235
    %v930 = vunpack.c.l.b16 %v236
    %v931 = vunpack.c.h.b16 %v236
    %v932 = vunpack.c.l.b16 %v237
    %v933 = vunpack.c.h.b16 %v237
    %v934 = vunpack.c.l.b16 %v238
    %v935 = vunpack.c.h.b16 %v238
    %v936 = vunpack.c.l.b16 %v239
    %v937 = vunpack.c.h.b16 %v239
    %v938 = vunpack.c.l.b16 %v240
    %v939 = vunpack.c.h.b16 %v240
    %v940 = vunpack.c.l.b16 %v241
    %v941 = vunpack.c.h.b16 %v241
    %v942 = vunpack.c.l.b16 %v242
    %v943 = vunpack.c.h.b16 %v242
    %v944 = vunpack.c.l.b16 %v243
    %v945 = vunpack.c.h.b16 %v243
    %v946 = vunpack.c.l.b16 %v244
    %v947 = vunpack.c.h.b16 %v244
    %v948 = vunpack.c.l.b16 %v245
    %v949 = vunpack.c.h.b16 %v245
    %v950 = vunpack.c.l.b16 %v246
    %v951 = vunpack.c.h.b16 %v246
    %v952 = vunpack.c.l.b16 %v247
    %v953 = vunpack.c.h.b16 %v247
    %v954 = vunpack.c.l.b16 %v248
    %v955 = vunpack.c.h.b16 %v248
    %v956 = vunpack.c.l.b16 %v249
    %v957 = vunpack.c.h.b16 %v249
    %v958 = vunpack.c.l.b16 %v250
    %v959 = vunpack.c.h.b16 %v250
    %v960 = vunpack.c.l.b16 %v251
    %v961 = vunpack.c.h.b16 %v251
    %v962 = vunpack.c.l.b16 %v252
    %v963 = vunpack.c.h.b16 %v252
    %v964 = vunpack.c.l.b16 %v253
    %v965 = vunpack.c.h.b16 %v253
    %v966 = vunpack.c.l.b16 %v254
    %v967 = vunpack.c.h.b16 %v254
    %v968 = vunpack.c.l.b16 %v255
    %v969 = vunpack.c.h.b16 %v255
    %v970 = vunpack.c.l.b16 %v256
    %v971 = vunpack.c.h.b16 %v256
    %v972 = vunpack.c.l.b16 %v257
    %v973 = vunpack.c.h.b16 %v257
    %v974 = vunpack.c.l.b16 %v258
    %v975 = vunpack.c.h.b16 %v258
    %v976 = vunpack.c.l.b16 %v259
    %v977 = vunpack.c.h.b16 %v259
    %v978 = vunpack.c.l.b16 %v260
    %v979 = vunpack.c.h.b16 %v260
    %v980 = vunpack.c.l.b16 %v261
    %v981 = vunpack.c.h.b16 %v261
    %v982 = vunpack.c.l.b16 %v262
    %v983 = vunpack.c.h.b16 %v262
    %v984 = vunpack.c.l.b16 %v263
    %v985 = vunpack.c.h.b16 %v263
    %v986 = vunpack.c.l.b16 %v264
    %v987 = vunpack.c.h.b16 %v264
    %v988 = vunpack.c.l.b16 %v265
    %v989 = vunpack.c.h.b16 %v265
    %v990 = vunpack.c.l.b16 %v266
    %v991 = vunpack.c.h.b16 %v266
    %v992 = vunpack.c.l.b16 %v267
    %v993 = vunpack.c.h.b16 %v267
    %v994 = vunpack.c.l.b16 %v268
    %v995 = vunpack.c.h.b16 %v268
    %v996 = vunpack.c.l.b16 %v269
    %v997 = vunpack.c.h.b16 %v269
    %v998 = vunpack.c.l.b16 %v270
    %v999 = vunpack.c.h.b16 %v270
    %v1000 = vunpack.c.l.b16 %v271
    %v1001 = vunpack.c.h.b16 %v271
    %v1002 = vunpack.c.l.b16 %v272
    %v1003 = vunpack.c.h.b16 %v272
    %v1004 = vunpack.c.l.b16 %v273
    %v1005 = vunpack.c.h.b16 %v273
    %v1006 = vunpack.c.l.b16 %v274
    %v1007 = vunpack.c.h.b16 %v274
    %v1008 = vunpack.c.l.b16 %v275
    %v1009 = vunpack.c.h.b16 %v275
    %v1010 = vunpack.c.l.b16 %v276
    %v1011 = vunpack.c.h.b16 %v276
    %v1012 = vunpack.c.l.b16 %v277
    %v1013 = vunpack.c.h.b16 %v277
    %v1014 = vunpack.c.l.b16 %v278
    %v1015 = vunpack.c.h.b16 %v278
    %v1016 = vunpack.c.l.b16 %v279
    %v1017 = vunpack.c.h.b16 %v279
    %v1018 = vunpack.c.l.b16 %v280
    %v1019 = vunpack.c.h.b16 %v280
    %v1020 = vunpack.c.l.b16 %v281
    %v1021 = vunpack.c.h.b16 %v281
    %v1022 = vunpack.c.l.b16 %v282
    %v1023 = vunpack.c.h.b16 %v282
    %v1024 = vunpack.c.l.b16 %v283
    %v1025 = vunpack.c.h.b16 %v283
    %v1026 = vunpack.c.l.b16 %v284
    %v1027 = vunpack.c.h.b16 %v284
    %v1028 = vunpack.c.l.b16 %v285
    %v1029 = vunpack.c.h.b16 %v285
    %v1030 = vunpack.c.l.b16 %v286
    %v1031 = vunpack.c.h.b16 %v286
    %v1032 = vunpack.c.l.b16 %v287
    %v1033 = vunpack.c.h.b16 %v287
    %v1034 = vunpack.c.l.b16 %v288
    %v1035 = vunpack.c.h.b16 %v288
    %v1036 = vunpack.c.l.b16 %v289
    %v1037 = vunpack.c.h.b16 %v289
    %v1038 = vunpack.c.l.b16 %v290
    %v1039 = vunpack.c.h.b16 %v290
    %v1040 = vunpack.c.l.b16 %v291
    %v1041 = vunpack.c.h.b16 %v291
    %v1042 = vunpack.c.l.b16 %v292
    %v1043 = vunpack.c.h.b16 %v292
    %v1044 = vunpack.c.l.b16 %v293
    %v1045 = vunpack.c.h.b16 %v293
    %v1046 = vunpack.c.l.b16 %v294
    %v1047 = vunpack.c.h.b16 %v294
    %v1048 = vunpack.c.l.b16 %v295
    %v1049 = vunpack.c.h.b16 %v295
    %v1050 = vunpack.c.l.b16 %v296
    %v1051 = vunpack.c.h.b16 %v296
    %v1052 = vunpack.c.l.b16 %v297
    %v1053 = vunpack.c.h.b16 %v297
    %v1054 = vunpack.c.l.b16 %v298
    %v1055 = vunpack.c.h.b16 %v298
    %v1056 = vunpack.c.l.b16 %v299
    %v1057 = vunpack.c.h.b16 %v299
    %v1058 = vunpack.c.l.b16 %v300
    %v1059 = vunpack.c.h.b16 %v300
    %v1060 = vunpack.c.l.b16 %v301
    %v1061 = vunpack.c.h.b16 %v301
    %v1062 = vunpack.c.l.b16 %v302
    %v1063 = vunpack.c.h.b16 %v302
    %v1064 = vunpack.c.l.b16 %v303
    %v1065 = vunpack.c.h.b16 %v303
    %v1066 = vunpack.c.l.b16 %v304
    %v1067 = vunpack.c.h.b16 %v304
    %v1068 = vunpack.c.l.b16 %v305
    %v1069 = vunpack.c.h.b16 %v305
    %v1070 = vunpack.c.l.b16 %v306
    %v1071 = vunpack.c.h.b16 %v306
    %v1072 = vunpack.c.l.b16 %v307
    %v1073 = vunpack.c.h.b16 %v307
    %v1074 = vunpack.c.l.b16 %v308
    %v1075 = vunpack.c.h.b16 %v308
    %v1076 = vunpack.c.l.b16 %v309
    %v1077 = vunpack.c.h.b16 %v309
    %v1078 = vunpack.c.l.b16 %v310
    %v1079 = vunpack.c.h.b16 %v310
    %v1080 = vunpack.c.l.b16 %v311
    %v1081 = vunpack.c.h.b16 %v311
    %v1082 = vunpack.c.l.b16 %v312
    %v1083 = vunpack.c.h.b16 %v312
    %v1084 = vunpack.c.l.b16 %v313
    %v1085 = vunpack.c.h.b16 %v313
    %v1086 = vunpack.c.l.b16 %v314
    %v1087 = vunpack.c.h.b16 %v314
    %v1088 = vunpack.c.l.b16 %v315
    %v1089 = vunpack.c.h.b16 %v315
    %v1090 = vunpack.c.l.b16 %v316
    %v1091 = vunpack.c.h.b16 %v316
    %v1092 = vunpack.c.l.b16 %v317
    %v1093 = vunpack.c.h.b16 %v317
    %v1094 = vunpack.c.l.b16 %v318
    %v1095 = vunpack.c.h.b16 %v318
    %v1096 = vunpack.c.l.b16 %v319
    %v1097 = vunpack.c.h.b16 %v319
    %v1098 = vunpack.c.l.b16 %v320
    %v1099 = vunpack.c.h.b16 %v320
    %v1100 = vunpack.c.l.b16 %v321
    %v1101 = vunpack.c.h.b16 %v321
    %v1102 = vunpack.c.l.b16 %v322
    %v1103 = vunpack.c.h.b16 %v322
    %v1104 = vunpack.c.l.b16 %v323
    %v1105 = vunpack.c.h.b16 %v323
    %v1106 = vunpack.c.l.b16 %v324
    %v1107 = vunpack.c.h.b16 %v324
    %v1108 = vunpack.c.l.b16 %v325
    %v1109 = vunpack.c.h.b16 %v325
    %v1110 = vunpack.c.l.b16 %v326
    %v1111 = vunpack.c.h.b16 %v326
    %v1112 = vunpack.c.l.b16 %v327
    %v1113 = vunpack.c.h.b16 %v327
    %v1114 = vunpack.c.l.b16 %v328
    %v1115 = vunpack.c.h.b16 %v328
    %v1116 = vunpack.c.l.b16 %v329
    %v1117 = vunpack.c.h.b16 %v329
    %v1118 = vunpack.c.l.b16 %v330
    %v1119 = vunpack.c.h.b16 %v330
    %v1120 = vunpack.c.l.b16 %v331
    %v1121 = vunpack.c.h.b16 %v331
    %v1122 = vunpack.c.l.b16 %v332
    %v1123 = vunpack.c.h.b16 %v332
    %v1124 = vunpack.c.l.b16 %v333
    %v1125 = vunpack.c.h.b16 %v333
    %v1126 = vunpack.c.l.b16 %v334
    %v1127 = vunpack.c.h.b16 %v334
    %v1128 = vunpack.c.l.b16 %v335
    %v1129 = vunpack.c.h.b16 %v335
    %v1130 = vunpack.c.l.b16 %v336
    %v1131 = vunpack.c.h.b16 %v336
    %v1132 = vunpack.c.l.b16 %v337
    %v1133 = vunpack.c.h.b16 %v337
    %v1134 = vunpack.c.l.b16 %v338
    %v1135 = vunpack.c.h.b16 %v338
    %v1136 = vunpack.c.l.b16 %v339
    %v1137 = vunpack.c.h.b16 %v339
    %v1138 = vunpack.c.l.b16 %v340
    %v1139 = vunpack.c.h.b16 %v340
    %v1140 = vunpack.c.l.b16 %v341
    %v1141 = vunpack.c.h.b16 %v341
    %v1142 = vunpack.c.l.b16 %v342
    %v1143 = vunpack.c.h.b16 %v342
    %v1144 = vunpack.c.l.b16 %v343
    %v1145 = vunpack.c.h.b16 %v343
    %v1146 = vunpack.c.l.b16 %v344
    %v1147 = vunpack.c.h.b16 %v344
    %v1148 = vunpack.c.l.b16 %v345
    %v1149 = vunpack.c.h.b16 %v345
    %v1150 = vunpack.c.l.b16 %v346
    %v1151 = vunpack.c.h.b16 %v346
    %v1152 = vunpack.c.l.b16 %v347
    %v1153 = vunpack.c.h.b16 %v347
    %v1154 = vunpack.c.l.b16 %v348
    %v1155 = vunpack.c.h.b16 %v348
    %v1156 = vunpack.c.l.b16 %v349
    %v1157 = vunpack.c.h.b16 %v349
    %v1158 = vunpack.c.l.b16 %v350
    %v1159 = vunpack.c.h.b16 %v350
    %v1160 = vunpack.c.l.b16 %v351
    %v1161 = vunpack.c.h.b16 %v351
    %v1162 = vunpack.c.l.b16 %v352
    %v1163 = vunpack.c.h.b16 %v352
    %v1164 = vunpack.c.l.b16 %v353
    %v1165 = vunpack.c.h.b16 %v353
    %v1166 = vunpack.c.l.b16 %v354
    %v1167 = vunpack.c.h.b16 %v354
    %v1168 = vunpack.c.l.b16 %v355
    %v1169 = vunpack.c.h.b16 %v355
    %v1170 = vunpack.c.l.b16 %v356
    %v1171 = vunpack.c.h.b16 %v356
    %v1172 = vunpack.c.l.b16 %v357
    %v1173 = vunpack.c.h.b16 %v357
    %v1174 = vunpack.c.l.b16 %v358
    %v1175 = vunpack.c.h.b16 %v358
    %v1176 = vunpack.c.l.b16 %v359
    %v1177 = vunpack.c.h.b16 %v359
    %v1178 = vunpack.c.l.b16 %v360
    %v1179 = vunpack.c.h.b16 %v360
    %v1180 = vunpack.c.l.b16 %v361
    %v1181 = vunpack.c.h.b16 %v361
    %v1182 = vunpack.c.l.b16 %v362
    %v1183 = vunpack.c.h.b16 %v362
    %v1184 = vunpack.c.l.b16 %v363
    %v1185 = vunpack.c.h.b16 %v363
    %v1186 = vunpack.c.l.b16 %v364
    %v1187 = vunpack.c.h.b16 %v364
    %v1188 = vunpack.c.l.b16 %v365
    %v1189 = vunpack.c.h.b16 %v365
    %v1190 = vunpack.c.l.b16 %v366
    %v1191 = vunpack.c.h.b16 %v366
    %v1192 = vunpack.c.l.b16 %v367
    %v1193 = vunpack.c.h.b16 %v367
    %v1194 = vunpack.c.l.b16 %v368
    %v1195 = vunpack.c.h.b16 %v368
    %v1196 = vunpack.c.l.b16 %v369
    %v1197 = vunpack.c.h.b16 %v369
    %v1198 = vunpack.c.l.b16 %v370
    %v1199 = vunpack.c.h.b16 %v370
    %v1200 = vunpack.c.l.b16 %v371
    %v1201 = vunpack.c.h.b16 %v371
    %v1202 = vunpack.c.l.b16 %v372
    %v1203 = vunpack.c.h.b16 %v372
    %v1204 = vunpack.c.l.b16 %v373
    %v1205 = vunpack.c.h.b16 %v373
    %v1206 = vunpack.c.l.b16 %v374
    %v1207 = vunpack.c.h.b16 %v374
    %v1208 = vunpack.c.l.b16 %v375
    %v1209 = vunpack.c.h.b16 %v375
    %v1210 = vunpack.c.l.b16 %v376
    %v1211 = vunpack.c.h.b16 %v376
    %v1212 = vunpack.c.l.b16 %v377
    %v1213 = vunpack.c.h.b16 %v377
    %v1214 = vunpack.c.l.b16 %v378
    %v1215 = vunpack.c.h.b16 %v378
    %v1216 = vunpack.c.l.b16 %v379
    %v1217 = vunpack.c.h.b16 %v379
    %v1218 = vunpack.c.l.b16 %v380
    %v1219 = vunpack.c.h.b16 %v380
    %v1220 = vunpack.c.l.b16 %v381
    %v1221 = vunpack.c.h.b16 %v381
    %v1222 = vunpack.c.l.b16 %v382
    %v1223 = vunpack.c.h.b16 %v382
    %v1224 = vunpack.c.l.b16 %v383
    %v1225 = vunpack.c.h.b16 %v383
    %v1226 = vunpack.c.l.b16 %v384
    %v1227 = vunpack.c.h.b16 %v384
    %v1228 = vunpack.c.l.b16 %v385
    %v1229 = vunpack.c.h.b16 %v385
    %v1230 = vunpack.c.l.b16 %v386
    %v1231 = vunpack.c.h.b16 %v386
    %v1232 = vunpack.c.l.b16 %v387
    %v1233 = vunpack.c.h.b16 %v387
    %v1234 = vunpack.c.l.b16 %v388
    %v1235 = vunpack.c.h.b16 %v388
    %v1236 = vunpack.c.l.b16 %v389
    %v1237 = vunpack.c.h.b16 %v389
    %v1238 = vunpack.c.l.b16 %v390
    %v1239 = vunpack.c.h.b16 %v390
    %v1240 = vunpack.c.l.b16 %v391
    %v1241 = vunpack.c.h.b16 %v391
    %v1242 = vpack.c.b16 %v686, %v682
    %v1243 = vpack.c.b16 %v687, %v683
    %v1244 = vpack.c.b16 %v688, %v684
    %v1245 = vpack.c.b16 %v689, %v685
    %v1246 = vpack.c.b16 %v694, %v690
    %v1247 = vpack.c.b16 %v695, %v691
    %v1248 = vpack.c.b16 %v696, %v692
    %v1249 = vpack.c.b16 %v697, %v693
    %v1250 = vpack.c.b16 %v702, %v698
    %v1251 = vpack.c.b16 %v703, %v699
    %v1252 = vpack.c.b16 %v704, %v700
    %v1253 = vpack.c.b16 %v705, %v701
    %v1254 = vpack.c.b16 %v710, %v706
    %v1255 = vpack.c.b16 %v711, %v707
    %v1256 = vpack.c.b16 %v712, %v708
    %v1257 = vpack.c.b16 %v713, %v709
    %v1258 = vpack.c.b16 %v718, %v714
    %v1259 = vpack.c.b16 %v719, %v715
    %v1260 = vpack.c.b16 %v720, %v716
    %v1261 = vpack.c.b16 %v721, %v717
    %v1262 = vpack.c.b16 %v726, %v722
    %v1263 = vpack.c.b16 %v727, %v723
    %v1264 = vpack.c.b16 %v728, %v724
    %v1265 = vpack.c.b16 %v729, %v725
    %v1266 = vpack.c.b16 %v734, %v730
    %v1267 = vpack.c.b16 %v735, %v731
    %v1268 = vpack.c.b16 %v736, %v732
    %v1269 = vpack.c.b16 %v737, %v733
    %v1270 = vpack.c.b16 %v742, %v738
    %v1271 = vpack.c.b16 %v743, %v739
    %v1272 = vpack.c.b16 %v744, %v740
    %v1273 = vpack.c.b16 %v745, %v741
    %v1274 = vpack.c.b16 %v750, %v746
    %v1275 = vpack.c.b16 %v751, %v747
    %v1276 = vpack.c.b16 %v752, %v748
    %v1277 = vpack.c.b16 %v753, %v749
    %v1278 = vpack.c.b16 %v758, %v754
    %v1279 = vpack.c.b16 %v759, %v755
    %v1280 = vpack.c.b16 %v760, %v756
    %v1281 = vpack.c.b16 %v761, %v757
    %v1282 = vpack.c.b16 %v766, %v762
    %v1283 = vpack.c.b16 %v767, %v763
    %v1284 = vpack.c.b16 %v768, %v764
    %v1285 = vpack.c.b16 %v769, %v765
    %v1286 = vpack.c.b16 %v774, %v770
    %v1287 = vpack.c.b16 %v775, %v771
    %v1288 = vpack.c.b16 %v776, %v772
    %v1289 = vpack.c.b16 %v777, %v773
    %v1290 = vpack.c.b16 %v782, %v778
    %v1291 = vpack.c.b16 %v783, %v779
    %v1292 = vpack.c.b16 %v784, %v780
    %v1293 = vpack.c.b16 %v785, %v781
    %v1294 = vpack.c.b16 %v790, %v786
    %v1295 = vpack.c.b16 %v791, %v787
    %v1296 = vpack.c.b16 %v792, %v788
    %v1297 = vpack.c.b16 %v793, %v789
    %v1298 = vpack.c.b16 %v798, %v794
    %v1299 = vpack.c.b16 %v799, %v795
    %v1300 = vpack.c.b16 %v800, %v796
    %v1301 = vpack.c.b16 %v801, %v797
    %v1302 = vpack.c.b16 %v806, %v802
    %v1303 = vpack.c.b16 %v807, %v803
    %v1304 = vpack.c.b16 %v808, %v804
    %v1305 = vpack.c.b16 %v809, %v805
    %v1306 = vpack.c.b16 %v814, %v810
    %v1307 = vpack.c.b16 %v815, %v811
    %v1308 = vpack.c.b16 %v816, %v812
    %v1309 = vpack.c.b16 %v817, %v813
    %v1310 = vpack.c.b16 %v822, %v818
    %v1311 = vpack.c.b16 %v823, %v819
    %v1312 = vpack.c.b16 %v824, %v820
    %v1313 = vpack.c.b16 %v825, %v821
    %v1314 = vpack.c.b16 %v830, %v826
    %v1315 = vpack.c.b16 %v831, %v827
    %v1316 = vpack.c.b16 %v832, %v828
    %v1317 = vpack.c.b16 %v833, %v829
    %v1318 = vpack.c.b16 %v838, %v834
    %v1319 = vpack.c.b16 %v839, %v835
    %v1320 = vpack.c.b16 %v840, %v836
    %v1321 = vpack.c.b16 %v841, %v837
    %v1322 = vpack.c.b16 %v846, %v842
    %v1323 = vpack.c.b16 %v847, %v843
    %v1324 = vpack.c.b16 %v848, %v844
    %v1325 = vpack.c.b16 %v849, %v845
    %v1326 = vpack.c.b16 %v854, %v850
    %v1327 = vpack.c.b16 %v855, %v851
    %v1328 = vpack.c.b16 %v856, %v852
    %v1329 = vpack.c.b16 %v857, %v853
    %v1330 = vpack.c.b16 %v862, %v858
    %v1331 = vpack.c.b16 %v863, %v859
    %v1332 = vpack.c.b16 %v864, %v860
    %v1333 = vpack.c.b16 %v865, %v861
    %v1334 = vpack.c.b16 %v870, %v866
    %v1335 = vpack.c.b16 %v871, %v867
    %v1336 = vpack.c.b16 %v872, %v868
    %v1337 = vpack.c.b16 %v873, %v869
    %v1338 = vpack.c.b16 %v878, %v874
    %v1339 = vpack.c.b16 %v879, %v875
    %v1340 = vpack.c.b16 %v880, %v876
    %v1341 = vpack.c.b16 %v881, %v877
    %v1342 = vpack.c.b16 %v886, %v882
    %v1343 = vpack.c.b16 %v887, %v883
    %v1344 = vpack.c.b16 %v888, %v884
    %v1345 = vpack.c.b16 %v889, %v885
    %v1346 = vpack.c.b16 %v894, %v890
    %v1347 = vpack.c.b16 %v895, %v891
    %v1348 = vpack.c.b16 %v896, %v892
    %v1349 = vpack.c.b16 %v897, %v893
    %v1350 = vpack.c.b16 %v902, %v898
    %v1351 = vpack.c.b16 %v903, %v899
    %v1352 = vpack.c.b16 %v904, %v900
    %v1353 = vpack.c.b16 %v905, %v901
    %v1354 = vpack.c.b16 %v910, %v906
    %v1355 = vpack.c.b16 %v911, %v907
    %v1356 = vpack.c.b16 %v912, %v908
    %v1357 = vpack.c.b16 %v913, %v909
    %v1358 = vpack.c.b16 %v918, %v914
    %v1359 = vpack.c.b16 %v919, %v915
    %v1360 = vpack.c.b16 %v920, %v916
    %v1361 = vpack.c.b16 %v921, %v917
    %v1362 = vpack.c.b16 %v926, %v922
    %v1363 = vpack.c.b16 %v927, %v923
    %v1364 = vpack.c.b16 %v928, %v924
    %v1365 = vpack.c.b16 %v929, %v925
    %v1366 = vpack.c.b16 %v934, %v930
    %v1367 = vpack.c.b16 %v935, %v931
    %v1368 = vpack.c.b16 %v936, %v932
    %v1369 = vpack.c.b16 %v937, %v933
    %v1370 = vpack.c.b16 %v942, %v938
    %v1371 = vpack.c.b16 %v943, %v939
    %v1372 = vpack.c.b16 %v944, %v940
    %v1373 = vpack.c.b16 %v945, %v941
    %v1374 = vpack.c.b16 %v950, %v946
    %v1375 = vpack.c.b16 %v951, %v947
    %v1376 = vpack.c.b16 %v952, %v948
    %v1377 = vpack.c.b16 %v953, %v949
    %v1378 = vpack.c.b16 %v958, %v954
    %v1379 = vpack.c.b16 %v959, %v955
    %v1380 = vpack.c.b16 %v960, %v956
    %v1381 = vpack.c.b16 %v961, %v957
    %v1382 = vpack.c.b16 %v966, %v962
    %v1383 = vpack.c.b16 %v967, %v963
    %v1384 = vpack.c.b16 %v968, %v964
    %v1385 = vpack.c.b16 %v969, %v965
    %v1386 = vpack.c.b16 %v974, %v970
    %v1387 = vpack.c.b16 %v975, %v971
    %v1388 = vpack.c.b16 %v976, %v972
    %v1389 = vpack.c.b16 %v977, %v973
    %v1390 = vpack.c.b16 %v982, %v978
    %v1391 = vpack.c.b16 %v983, %v979
    %v1392 = vpack.c.b16 %v984, %v980
    %v1393 = vpack.c.b16 %v985, %v981
    %v1394 = vpack.c.b16 %v990, %v986
    %v1395 = vpack.c.b16 %v991, %v987
    %v1396 = vpack.c.b16 %v992, %v988
    %v1397 = vpack.c.b16 %v993, %v989
    %v1398 = vpack.c.b16 %v998, %v994
    %v1399 = vpack.c.b16 %v999, %v995
    %v1400 = vpack.c.b16 %v1000, %v996
    %v1401 = vpack.c.b16 %v1001, %v997
    %v1402 = vpack.c.b16 %v1006, %v1002
    %v1403 = vpack.c.b16 %v1007, %v1003
    %v1404 = vpack.c.b16 %v1008, %v1004
    %v1405 = vpack.c.b16 %v1009, %v1005
    %v1406 = vpack.c.b16 %v1014, %v1010
    %v1407 = vpack.c.b16 %v1015, %v1011
    %v1408 = vpack.c.b16 %v1016, %v1012
    %v1409 = vpack.c.b16 %v1017, %v1013
    %v1410 = vpack.c.b16 %v1022, %v1018
    %v1411 = vpack.c.b16 %v1023, %v1019
    %v1412 = vpack.c.b16 %v1024, %v1020
    %v1413 = vpack.c.b16 %v1025, %v1021
    %v1414 = vpack.c.b16 %v1030, %v1026
    %v1415 = vpack.c.b16 %v1031, %v1027
    %v1416 = vpack.c.b16 %v1032, %v1028
    %v1417 = vpack.c.b16 %v1033, %v1029
    %v1418 = vpack.c.b16 %v1038, %v1034
    %v1419 = vpack.c.b16 %v1039, %v1035
    %v1420 = vpack.c.b16 %v1040, %v1036
    %v1421 = vpack.c.b16 %v1041, %v1037
    %v1422 = vpack.c.b16 %v1046, %v1042
    %v1423 = vpack.c.b16 %v1047, %v1043
    %v1424 = vpack.c.b16 %v1048, %v1044
    %v1425 = vpack.c.b16 %v1049, %v1045
    %v1426 = vpack.c.b16 %v1054, %v1050
    %v1427 = vpack.c.b16 %v1055, %v1051
    %v1428 = vpack.c.b16 %v1056, %v1052
    %v1429 = vpack.c.b16 %v1057, %v1053
    %v1430 = vpack.c.b16 %v1062, %v1058
    %v1431 = vpack.c.b16 %v1063, %v1059
    %v1432 = vpack.c.b16 %v1064, %v1060
    %v1433 = vpack.c.b16 %v1065, %v1061
    %v1434 = vpack.c.b16 %v1070, %v1066
    %v1435 = vpack.c.b16 %v1071, %v1067
    %v1436 = vpack.c.b16 %v1072, %v1068
    %v1437 = vpack.c.b16 %v1073, %v1069
    %v1438 = vpack.c.b16 %v1078, %v1074
    %v1439 = vpack.c.b16 %v1079, %v1075
    %v1440 = vpack.c.b16 %v1080, %v1076
    %v1441 = vpack.c.b16 %v1081, %v1077
    %v1442 = vpack.c.b16 %v1086, %v1082
    %v1443 = vpack.c.b16 %v1087, %v1083
    %v1444 = vpack.c.b16 %v1088, %v1084
    %v1445 = vpack.c.b16 %v1089, %v1085
    %v1446 = vpack.c.b16 %v1094, %v1090
    %v1447 = vpack.c.b16 %v1095, %v1091
    %v1448 = vpack.c.b16 %v1096, %v1092
    %v1449 = vpack.c.b16 %v1097, %v1093
    %v1450 = vpack.c.b16 %v1102, %v1098
    %v1451 = vpack.c.b16 %v1103, %v1099
    %v1452 = vpack.c.b16 %v1104, %v1100
    %v1453 = vpack.c.b16 %v1105, %v1101
    %v1454 = vpack.c.b16 %v1110, %v1106
    %v1455 = vpack.c.b16 %v1111, %v1107
    %v1456 = vpack.c.b16 %v1112, %v1108
    %v1457 = vpack.c.b16 %v1113, %v1109
    %v1458 = vpack.c.b16 %v1118, %v1114
    %v1459 = vpack.c.b16 %v1119, %v1115
    %v1460 = vpack.c.b16 %v1120, %v1116
    %v1461 = vpack.c.b16 %v1121, %v1117
    %v1462 = vpack.c.b16 %v1126, %v1122
    %v1463 = vpack.c.b16 %v1127, %v1123
    %v1464 = vpack.c.b16 %v1128, %v1124
    %v1465 = vpack.c.b16 %v1129, %v1125
    %v1466 = vpack.c.b16 %v1134, %v1130
    %v1467 = vpack.c.b16 %v1135, %v1131
    %v1468 = vpack.c.b16 %v1136, %v1132
    %v1469 = vpack.c.b16 %v1137, %v1133
    %v1470 = vpack.c.b16 %v1142, %v1138
    %v1471 = vpack.c.b16 %v1143, %v1139
    %v1472 = vpack.c.b16 %v1144, %v1140
    %v1473 = vpack.c.b16 %v1145, %v1141
    %v1474 = vpack.c.b16 %v1150, %v1146
    %v1475 = vpack.c.b16 %v1151, %v1147
    %v1476 = vpack.c.b16 %v1152, %v1148
    %v1477 = vpack.c.b16 %v1153, %v1149
    %v1478 = vpack.c.b16 %v1158, %v1154
    %v1479 = vpack.c.b16 %v1159, %v1155
    %v1480 = vpack.c.b16 %v1160, %v1156
    %v1481 = vpack.c.b16 %v1161, %v1157
    %v1482 = vpack.c.b16 %v1166, %v1162
    %v1483 = vpack.c.b16 %v1167, %v1163
    %v1484 = vpack.c.b16 %v1168, %v1164
    %v1485 = vpack.c.b16 %v1169, %v1165
    %v1486 = vpack.c.b16 %v1174, %v1170
    %v1487 = vpack.c.b16 %v1175, %v1171
    %v1488 = vpack.c.b16 %v1176, %v1172
    %v1489 = vpack.c.b16 %v1177, %v1173
    %v1490 = vpack.c.b16 %v1182, %v1178
    %v1491 = vpack.c.b16 %v1183, %v1179
    %v1492 = vpack.c.b16 %v1184, %v1180
    %v1493 = vpack.c.b16 %v1185, %v1181
    %v1494 = vpack.c.b16 %v1190, %v1186
    %v1495 = vpack.c.b16 %v1191, %v1187
    %v1496 = vpack.c.b16 %v1192, %v1188
    %v1497 = vpack.c.b16 %v1193, %v1189
    %v1498 = vpack.c.b16 %v1198, %v1194
    %v1499 = vpack.c.b16 %v1199, %v1195
    %v1500 = vpack.c.b16 %v1200, %v1196
    %v1501 = vpack.c.b16 %v1201, %v1197
    %v1502 = vpack.c.b16 %v1206, %v1202
    %v1503 = vpack.c.b16 %v1207, %v1203
    %v1504 = vpack.c.b16 %v1208, %v1204
    %v1505 = vpack.c.b16 %v1209, %v1205
    %v1506 = vpack.c.b16 %v1214, %v1210
    %v1507 = vpack.c.b16 %v1215, %v1211
    %v1508 = vpack.c.b16 %v1216, %v1212
    %v1509 = vpack.c.b16 %v1217, %v1213
    %v1510 = vpack.c.b16 %v1222, %v1218
    %v1511 = vpack.c.b16 %v1223, %v1219
    %v1512 = vpack.c.b16 %v1224, %v1220
    %v1513 = vpack.c.b16 %v1225, %v1221
    %v1514 = vpack.c.b16 %v1230, %v1226
    %v1515 = vpack.c.b16 %v1231, %v1227
    %v1516 = vpack.c.b16 %v1232, %v1228
    %v1517 = vpack.c.b16 %v1233, %v1229
    %v1518 = vpack.c.b16 %v1238, %v1234
    %v1519 = vpack.c.b16 %v1239, %v1235
    %v1520 = vpack.c.b16 %v1240, %v1236
    %v1521 = vpack.c.b16 %v1241, %v1237
    %vm1802 = vcmask 785408
    %v1804 = vsel %vm1802, %v111, 0
    %1806 = vmatpush.bf16.msra.mxu0 %v1270
    %1807 = vmatpush.bf16.msra.mxu0 %v1266
    %1808 = vmatpush.bf16.msra.mxu0 %v1262
    %1809 = vmatpush.bf16.msra.mxu0 %v1258
    %1810 = vmatpush.bf16.msra.mxu0 %v1254
    %1811 = vmatpush.bf16.msra.mxu0 %v1250
    %1812 = vmatpush.bf16.msra.mxu0 %v1246
    %1813 = vmatpush.bf16.msra.mxu0 %v1242
    %1814 = vmatmul.bf16.gmra.mxu0 %v103
    %v1815 = vpop.f32.mrf.mxu0
    %v1816 = vadd.f32 %v394, %v1815
    %v1817 = vpop.f32.mrf.mxu0
    %1818 = vdwg.mxu0
    %1819 = vmatpush.bf16.msra.mxu0 %v1302
    %1820 = vmatpush.bf16.msra.mxu0 %v1298
    %1821 = vmatpush.bf16.msra.mxu0 %v1294
    %1822 = vmatpush.bf16.msra.mxu0 %v1290
    %1823 = vmatpush.bf16.msra.mxu0 %v1286
    %1824 = vmatpush.bf16.msra.mxu0 %v1282
    %1825 = vmatpush.bf16.msra.mxu0 %v1278
    %1826 = vmatpush.bf16.msra.mxu0 %v1274
    %1827 = vmatmul.bf16.gmra.mxu0 %v104
    %v1828 = vpop.f32.mrf.mxu0
    %v1829 = vadd.f32 %v1816, %v1828
    %v1830 = vpop.f32.mrf.mxu0
    %1831 = vdwg.mxu0
    %1832 = vmatpush.bf16.msra.mxu0 %v1334
    %1833 = vmatpush.bf16.msra.mxu0 %v1330
    %1834 = vmatpush.bf16.msra.mxu0 %v1326
    %1835 = vmatpush.bf16.msra.mxu0 %v1322
    %1836 = vmatpush.bf16.msra.mxu0 %v1318
    %1837 = vmatpush.bf16.msra.mxu0 %v1314
    %1838 = vmatpush.bf16.msra.mxu0 %v1310
    %1839 = vmatpush.bf16.msra.mxu0 %v1306
    %1840 = vmatmul.bf16.gmra.mxu0 %v105
    %v1841 = vpop.f32.mrf.mxu0
    %v1842 = vadd.f32 %v1829, %v1841
    %v1843 = vpop.f32.mrf.mxu0
    %1844 = vdwg.mxu0
    %1845 = vmatpush.bf16.msra.mxu0 %v1366
    %1846 = vmatpush.bf16.msra.mxu0 %v1362
    %1847 = vmatpush.bf16.msra.mxu0 %v1358
    %1848 = vmatpush.bf16.msra.mxu0 %v1354
    %1849 = vmatpush.bf16.msra.mxu0 %v1350
    %1850 = vmatpush.bf16.msra.mxu0 %v1346
    %1851 = vmatpush.bf16.msra.mxu0 %v1342
    %1852 = vmatpush.bf16.msra.mxu0 %v1338
    %1853 = vmatmul.bf16.gmra.mxu0 %v106
    %v1854 = vpop.f32.mrf.mxu0
    %v1855 = vadd.f32 %v1842, %v1854
    %v1856 = vpop.f32.mrf.mxu0
    %1857 = vdwg.mxu0
    %1858 = vmatpush.bf16.msra.mxu0 %v1398
    %1859 = vmatpush.bf16.msra.mxu0 %v1394
    %1860 = vmatpush.bf16.msra.mxu0 %v1390
    %1861 = vmatpush.bf16.msra.mxu0 %v1386
    %1862 = vmatpush.bf16.msra.mxu0 %v1382
    %1863 = vmatpush.bf16.msra.mxu0 %v1378
    %1864 = vmatpush.bf16.msra.mxu0 %v1374
    %1865 = vmatpush.bf16.msra.mxu0 %v1370
    %1866 = vmatmul.bf16.gmra.mxu0 %v107
    %v1867 = vpop.f32.mrf.mxu0
    %v1868 = vadd.f32 %v1855, %v1867
    %v1869 = vpop.f32.mrf.mxu0
    %1870 = vdwg.mxu0
    %1871 = vmatpush.bf16.msra.mxu0 %v1430
    %1872 = vmatpush.bf16.msra.mxu0 %v1426
    %1873 = vmatpush.bf16.msra.mxu0 %v1422
    %1874 = vmatpush.bf16.msra.mxu0 %v1418
    %1875 = vmatpush.bf16.msra.mxu0 %v1414
    %1876 = vmatpush.bf16.msra.mxu0 %v1410
    %1877 = vmatpush.bf16.msra.mxu0 %v1406
    %1878 = vmatpush.bf16.msra.mxu0 %v1402
    %1879 = vmatmul.bf16.gmra.mxu0 %v108
    %v1880 = vpop.f32.mrf.mxu0
    %v1881 = vadd.f32 %v1868, %v1880
    %v1882 = vpop.f32.mrf.mxu0
    %1883 = vdwg.mxu0
    %1884 = vmatpush.bf16.msra.mxu0 %v1462
    %1885 = vmatpush.bf16.msra.mxu0 %v1458
    %1886 = vmatpush.bf16.msra.mxu0 %v1454
    %1887 = vmatpush.bf16.msra.mxu0 %v1450
    %1888 = vmatpush.bf16.msra.mxu0 %v1446
    %1889 = vmatpush.bf16.msra.mxu0 %v1442
    %1890 = vmatpush.bf16.msra.mxu0 %v1438
    %1891 = vmatpush.bf16.msra.mxu0 %v1434
    %1892 = vmatmul.bf16.gmra.mxu0 %v109
    %v1893 = vpop.f32.mrf.mxu0
    %v1894 = vadd.f32 %v1881, %v1893
    %v1895 = vpop.f32.mrf.mxu0
    %1896 = vdwg.mxu0
    %1897 = vmatpush.bf16.msra.mxu0 %v1494
    %1898 = vmatpush.bf16.msra.mxu0 %v1490
    %1899 = vmatpush.bf16.msra.mxu0 %v1486
    %1900 = vmatpush.bf16.msra.mxu0 %v1482
    %1901 = vmatpush.bf16.msra.mxu0 %v1478
    %1902 = vmatpush.bf16.msra.mxu0 %v1474
    %1903 = vmatpush.bf16.msra.mxu0 %v1470
    %1904 = vmatpush.bf16.msra.mxu0 %v1466
    %1905 = vmatmul.bf16.gmra.mxu0 %v110
    %v1906 = vpop.f32.mrf.mxu0
    %v1907 = vadd.f32 %v1894, %v1906
    %v1908 = vpop.f32.mrf.mxu0
    %1909 = vdwg.mxu0
    %1910 = vmatpush.bf16.msra.mxu0 0
    %1911 = vmatpush.bf16.msra.mxu0 0
    %1912 = vmatpush.bf16.msra.mxu0 %v1518
    %1913 = vmatpush.bf16.msra.mxu0 %v1514
    %1914 = vmatpush.bf16.msra.mxu0 %v1510
    %1915 = vmatpush.bf16.msra.mxu0 %v1506
    %1916 = vmatpush.bf16.msra.mxu0 %v1502
    %1917 = vmatpush.bf16.msra.mxu0 %v1498
    %1918 = vmatmul.bf16.gmra.mxu0 %v1804
    %v1919 = vpop.f32.mrf.mxu0
    %v1920 = vadd.f32 %v1907, %v1919
    %v1921 = vpop.f32.mrf.mxu0
    %1922 = vdwg.mxu0
    %1923 = vmatpush.bf16.msra.mxu0 %v1271
    %1924 = vmatpush.bf16.msra.mxu0 %v1267
    %1925 = vmatpush.bf16.msra.mxu0 %v1263
    %1926 = vmatpush.bf16.msra.mxu0 %v1259
    %1927 = vmatpush.bf16.msra.mxu0 %v1255
    %1928 = vmatpush.bf16.msra.mxu0 %v1251
    %1929 = vmatpush.bf16.msra.mxu0 %v1247
    %1930 = vmatpush.bf16.msra.mxu0 %v1243
    %1931 = vmatmul.bf16.gmra.mxu0 %v103
    %v1932 = vpop.f32.mrf.mxu0
    %v1933 = vadd.f32 %v395, %v1932
    %v1934 = vpop.f32.mrf.mxu0
    %1935 = vdwg.mxu0
    %1936 = vmatpush.bf16.msra.mxu0 %v1303
    %1937 = vmatpush.bf16.msra.mxu0 %v1299
    %1938 = vmatpush.bf16.msra.mxu0 %v1295
    %1939 = vmatpush.bf16.msra.mxu0 %v1291
    %1940 = vmatpush.bf16.msra.mxu0 %v1287
    %1941 = vmatpush.bf16.msra.mxu0 %v1283
    %1942 = vmatpush.bf16.msra.mxu0 %v1279
    %1943 = vmatpush.bf16.msra.mxu0 %v1275
    %1944 = vmatmul.bf16.gmra.mxu0 %v104
    %v1945 = vpop.f32.mrf.mxu0
    %v1946 = vadd.f32 %v1933, %v1945
    %v1947 = vpop.f32.mrf.mxu0
    %1948 = vdwg.mxu0
    %1949 = vmatpush.bf16.msra.mxu0 %v1335
    %1950 = vmatpush.bf16.msra.mxu0 %v1331
    %1951 = vmatpush.bf16.msra.mxu0 %v1327
    %1952 = vmatpush.bf16.msra.mxu0 %v1323
    %1953 = vmatpush.bf16.msra.mxu0 %v1319
    %1954 = vmatpush.bf16.msra.mxu0 %v1315
    %1955 = vmatpush.bf16.msra.mxu0 %v1311
    %1956 = vmatpush.bf16.msra.mxu0 %v1307
    %1957 = vmatmul.bf16.gmra.mxu0 %v105
    %v1958 = vpop.f32.mrf.mxu0
    %v1959 = vadd.f32 %v1946, %v1958
    %v1960 = vpop.f32.mrf.mxu0
    %1961 = vdwg.mxu0
    %1962 = vmatpush.bf16.msra.mxu0 %v1367
    %1963 = vmatpush.bf16.msra.mxu0 %v1363
    %1964 = vmatpush.bf16.msra.mxu0 %v1359
    %1965 = vmatpush.bf16.msra.mxu0 %v1355
    %1966 = vmatpush.bf16.msra.mxu0 %v1351
    %1967 = vmatpush.bf16.msra.mxu0 %v1347
    %1968 = vmatpush.bf16.msra.mxu0 %v1343
    %1969 = vmatpush.bf16.msra.mxu0 %v1339
    %1970 = vmatmul.bf16.gmra.mxu0 %v106
    %v1971 = vpop.f32.mrf.mxu0
    %v1972 = vadd.f32 %v1959, %v1971
    %v1973 = vpop.f32.mrf.mxu0
    %1974 = vdwg.mxu0
    %1975 = vmatpush.bf16.msra.mxu0 %v1399
    %1976 = vmatpush.bf16.msra.mxu0 %v1395
    %1977 = vmatpush.bf16.msra.mxu0 %v1391
    %1978 = vmatpush.bf16.msra.mxu0 %v1387
    %1979 = vmatpush.bf16.msra.mxu0 %v1383
    %1980 = vmatpush.bf16.msra.mxu0 %v1379
    %1981 = vmatpush.bf16.msra.mxu0 %v1375
    %1982 = vmatpush.bf16.msra.mxu0 %v1371
    %1983 = vmatmul.bf16.gmra.mxu0 %v107
    %v1984 = vpop.f32.mrf.mxu0
    %v1985 = vadd.f32 %v1972, %v1984
    %v1986 = vpop.f32.mrf.mxu0
    %1987 = vdwg.mxu0
    %1988 = vmatpush.bf16.msra.mxu0 %v1431
    %1989 = vmatpush.bf16.msra.mxu0 %v1427
    %1990 = vmatpush.bf16.msra.mxu0 %v1423
    %1991 = vmatpush.bf16.msra.mxu0 %v1419
    %1992 = vmatpush.bf16.msra.mxu0 %v1415
    %1993 = vmatpush.bf16.msra.mxu0 %v1411
    %1994 = vmatpush.bf16.msra.mxu0 %v1407
    %1995 = vmatpush.bf16.msra.mxu0 %v1403
    %1996 = vmatmul.bf16.gmra.mxu0 %v108
    %v1997 = vpop.f32.mrf.mxu0
    %v1998 = vadd.f32 %v1985, %v1997
    %v1999 = vpop.f32.mrf.mxu0
    %2000 = vdwg.mxu0
    %2001 = vmatpush.bf16.msra.mxu0 %v1463
    %2002 = vmatpush.bf16.msra.mxu0 %v1459
    %2003 = vmatpush.bf16.msra.mxu0 %v1455
    %2004 = vmatpush.bf16.msra.mxu0 %v1451
    %2005 = vmatpush.bf16.msra.mxu0 %v1447
    %2006 = vmatpush.bf16.msra.mxu0 %v1443
    %2007 = vmatpush.bf16.msra.mxu0 %v1439
    %2008 = vmatpush.bf16.msra.mxu0 %v1435
    %2009 = vmatmul.bf16.gmra.mxu0 %v109
    %v2010 = vpop.f32.mrf.mxu0
    %v2011 = vadd.f32 %v1998, %v2010
    %v2012 = vpop.f32.mrf.mxu0
    %2013 = vdwg.mxu0
    %2014 = vmatpush.bf16.msra.mxu0 %v1495
    %2015 = vmatpush.bf16.msra.mxu0 %v1491
    %2016 = vmatpush.bf16.msra.mxu0 %v1487
    %2017 = vmatpush.bf16.msra.mxu0 %v1483
    %2018 = vmatpush.bf16.msra.mxu0 %v1479
    %2019 = vmatpush.bf16.msra.mxu0 %v1475
    %2020 = vmatpush.bf16.msra.mxu0 %v1471
    %2021 = vmatpush.bf16.msra.mxu0 %v1467
    %2022 = vmatmul.bf16.gmra.mxu0 %v110
    %v2023 = vpop.f32.mrf.mxu0
    %v2024 = vadd.f32 %v2011, %v2023
    %v2025 = vpop.f32.mrf.mxu0
    %2026 = vdwg.mxu0
    %2027 = vmatpush.bf16.msra.mxu0 0
    %2028 = vmatpush.bf16.msra.mxu0 0
    %2029 = vmatpush.bf16.msra.mxu0 %v1519
    %2030 = vmatpush.bf16.msra.mxu0 %v1515
    %2031 = vmatpush.bf16.msra.mxu0 %v1511
    %2032 = vmatpush.bf16.msra.mxu0 %v1507
    %2033 = vmatpush.bf16.msra.mxu0 %v1503
    %2034 = vmatpush.bf16.msra.mxu0 %v1499
    %2035 = vmatmul.bf16.gmra.mxu0 %v1804
    %v2036 = vpop.f32.mrf.mxu0
    %v2037 = vadd.f32 %v2024, %v2036
    %v2038 = vpop.f32.mrf.mxu0
    %2039 = vdwg.mxu0
    %2040 = vmatpush.bf16.msra.mxu0 %v1272
    %2041 = vmatpush.bf16.msra.mxu0 %v1268
    %2042 = vmatpush.bf16.msra.mxu0 %v1264
    %2043 = vmatpush.bf16.msra.mxu0 %v1260
    %2044 = vmatpush.bf16.msra.mxu0 %v1256
    %2045 = vmatpush.bf16.msra.mxu0 %v1252
    %2046 = vmatpush.bf16.msra.mxu0 %v1248
    %2047 = vmatpush.bf16.msra.mxu0 %v1244
    %2048 = vmatmul.bf16.gmra.mxu0 %v103
    %v2049 = vpop.f32.mrf.mxu0
    %v2050 = vadd.f32 %v396, %v2049
    %v2051 = vpop.f32.mrf.mxu0
    %2052 = vdwg.mxu0
    %2053 = vmatpush.bf16.msra.mxu0 %v1304
    %2054 = vmatpush.bf16.msra.mxu0 %v1300
    %2055 = vmatpush.bf16.msra.mxu0 %v1296
    %2056 = vmatpush.bf16.msra.mxu0 %v1292
    %2057 = vmatpush.bf16.msra.mxu0 %v1288
    %2058 = vmatpush.bf16.msra.mxu0 %v1284
    %2059 = vmatpush.bf16.msra.mxu0 %v1280
    %2060 = vmatpush.bf16.msra.mxu0 %v1276
    %2061 = vmatmul.bf16.gmra.mxu0 %v104
    %v2062 = vpop.f32.mrf.mxu0
    %v2063 = vadd.f32 %v2050, %v2062
    %v2064 = vpop.f32.mrf.mxu0
    %2065 = vdwg.mxu0
    %2066 = vmatpush.bf16.msra.mxu0 %v1336
    %2067 = vmatpush.bf16.msra.mxu0 %v1332
    %2068 = vmatpush.bf16.msra.mxu0 %v1328
    %2069 = vmatpush.bf16.msra.mxu0 %v1324
    %2070 = vmatpush.bf16.msra.mxu0 %v1320
    %2071 = vmatpush.bf16.msra.mxu0 %v1316
    %2072 = vmatpush.bf16.msra.mxu0 %v1312
    %2073 = vmatpush.bf16.msra.mxu0 %v1308
    %2074 = vmatmul.bf16.gmra.mxu0 %v105
    %v2075 = vpop.f32.mrf.mxu0
    %v2076 = vadd.f32 %v2063, %v2075
    %v2077 = vpop.f32.mrf.mxu0
    %2078 = vdwg.mxu0
    %2079 = vmatpush.bf16.msra.mxu0 %v1368
    %2080 = vmatpush.bf16.msra.mxu0 %v1364
    %2081 = vmatpush.bf16.msra.mxu0 %v1360
    %2082 = vmatpush.bf16.msra.mxu0 %v1356
    %2083 = vmatpush.bf16.msra.mxu0 %v1352
    %2084 = vmatpush.bf16.msra.mxu0 %v1348
    %2085 = vmatpush.bf16.msra.mxu0 %v1344
    %2086 = vmatpush.bf16.msra.mxu0 %v1340
    %2087 = vmatmul.bf16.gmra.mxu0 %v106
    %v2088 = vpop.f32.mrf.mxu0
    %v2089 = vadd.f32 %v2076, %v2088
    %v2090 = vpop.f32.mrf.mxu0
    %2091 = vdwg.mxu0
    %2092 = vmatpush.bf16.msra.mxu0 %v1400
    %2093 = vmatpush.bf16.msra.mxu0 %v1396
    %2094 = vmatpush.bf16.msra.mxu0 %v1392
    %2095 = vmatpush.bf16.msra.mxu0 %v1388
    %2096 = vmatpush.bf16.msra.mxu0 %v1384
    %2097 = vmatpush.bf16.msra.mxu0 %v1380
    %2098 = vmatpush.bf16.msra.mxu0 %v1376
    %2099 = vmatpush.bf16.msra.mxu0 %v1372
    %2100 = vmatmul.bf16.gmra.mxu0 %v107
    %v2101 = vpop.f32.mrf.mxu0
    %v2102 = vadd.f32 %v2089, %v2101
    %v2103 = vpop.f32.mrf.mxu0
    %2104 = vdwg.mxu0
    %2105 = vmatpush.bf16.msra.mxu0 %v1432
    %2106 = vmatpush.bf16.msra.mxu0 %v1428
    %2107 = vmatpush.bf16.msra.mxu0 %v1424
    %2108 = vmatpush.bf16.msra.mxu0 %v1420
    %2109 = vmatpush.bf16.msra.mxu0 %v1416
    %2110 = vmatpush.bf16.msra.mxu0 %v1412
    %2111 = vmatpush.bf16.msra.mxu0 %v1408
    %2112 = vmatpush.bf16.msra.mxu0 %v1404
    %2113 = vmatmul.bf16.gmra.mxu0 %v108
    %v2114 = vpop.f32.mrf.mxu0
    %v2115 = vadd.f32 %v2102, %v2114
    %v2116 = vpop.f32.mrf.mxu0
    %2117 = vdwg.mxu0
    %2118 = vmatpush.bf16.msra.mxu0 %v1464
    %2119 = vmatpush.bf16.msra.mxu0 %v1460
    %2120 = vmatpush.bf16.msra.mxu0 %v1456
    %2121 = vmatpush.bf16.msra.mxu0 %v1452
    %2122 = vmatpush.bf16.msra.mxu0 %v1448
    %2123 = vmatpush.bf16.msra.mxu0 %v1444
    %2124 = vmatpush.bf16.msra.mxu0 %v1440
    %2125 = vmatpush.bf16.msra.mxu0 %v1436
    %2126 = vmatmul.bf16.gmra.mxu0 %v109
    %v2127 = vpop.f32.mrf.mxu0
    %v2128 = vadd.f32 %v2115, %v2127
    %v2129 = vpop.f32.mrf.mxu0
    %2130 = vdwg.mxu0
    %2131 = vmatpush.bf16.msra.mxu0 %v1496
    %2132 = vmatpush.bf16.msra.mxu0 %v1492
    %2133 = vmatpush.bf16.msra.mxu0 %v1488
    %2134 = vmatpush.bf16.msra.mxu0 %v1484
    %2135 = vmatpush.bf16.msra.mxu0 %v1480
    %2136 = vmatpush.bf16.msra.mxu0 %v1476
    %2137 = vmatpush.bf16.msra.mxu0 %v1472
    %2138 = vmatpush.bf16.msra.mxu0 %v1468
    %2139 = vmatmul.bf16.gmra.mxu0 %v110
    %v2140 = vpop.f32.mrf.mxu0
    %v2141 = vadd.f32 %v2128, %v2140
    %v2142 = vpop.f32.mrf.mxu0
    %2143 = vdwg.mxu0
    %2144 = vmatpush.bf16.msra.mxu0 0
    %2145 = vmatpush.bf16.msra.mxu0 0
    %2146 = vmatpush.bf16.msra.mxu0 %v1520
    %2147 = vmatpush.bf16.msra.mxu0 %v1516
    %2148 = vmatpush.bf16.msra.mxu0 %v1512
    %2149 = vmatpush.bf16.msra.mxu0 %v1508
    %2150 = vmatpush.bf16.msra.mxu0 %v1504
    %2151 = vmatpush.bf16.msra.mxu0 %v1500
    %2152 = vmatmul.bf16.gmra.mxu0 %v1804
    %v2153 = vpop.f32.mrf.mxu0
    %v2154 = vadd.f32 %v2141, %v2153
    %v2155 = vpop.f32.mrf.mxu0
    %2156 = vdwg.mxu0
    %2157 = vmatpush.bf16.msra.mxu0 %v1273
    %2158 = vmatpush.bf16.msra.mxu0 %v1269
    %2159 = vmatpush.bf16.msra.mxu0 %v1265
    %2160 = vmatpush.bf16.msra.mxu0 %v1261
    %2161 = vmatpush.bf16.msra.mxu0 %v1257
    %2162 = vmatpush.bf16.msra.mxu0 %v1253
    %2163 = vmatpush.bf16.msra.mxu0 %v1249
    %2164 = vmatpush.bf16.msra.mxu0 %v1245
    %2165 = vmatmul.bf16.gmra.mxu0 %v103
    %v2166 = vpop.f32.mrf.mxu0
    %v2167 = vadd.f32 %v397, %v2166
    %v2168 = vpop.f32.mrf.mxu0
    %2169 = vdwg.mxu0
    %2170 = vmatpush.bf16.msra.mxu0 %v1305
    %2171 = vmatpush.bf16.msra.mxu0 %v1301
    %2172 = vmatpush.bf16.msra.mxu0 %v1297
    %2173 = vmatpush.bf16.msra.mxu0 %v1293
    %2174 = vmatpush.bf16.msra.mxu0 %v1289
    %2175 = vmatpush.bf16.msra.mxu0 %v1285
    %2176 = vmatpush.bf16.msra.mxu0 %v1281
    %2177 = vmatpush.bf16.msra.mxu0 %v1277
    %2178 = vmatmul.bf16.gmra.mxu0 %v104
    %v2179 = vpop.f32.mrf.mxu0
    %v2180 = vadd.f32 %v2167, %v2179
    %v2181 = vpop.f32.mrf.mxu0
    %2182 = vdwg.mxu0
    %2183 = vmatpush.bf16.msra.mxu0 %v1337
    %2184 = vmatpush.bf16.msra.mxu0 %v1333
    %2185 = vmatpush.bf16.msra.mxu0 %v1329
    %2186 = vmatpush.bf16.msra.mxu0 %v1325
    %2187 = vmatpush.bf16.msra.mxu0 %v1321
    %2188 = vmatpush.bf16.msra.mxu0 %v1317
    %2189 = vmatpush.bf16.msra.mxu0 %v1313
    %2190 = vmatpush.bf16.msra.mxu0 %v1309
    %2191 = vmatmul.bf16.gmra.mxu0 %v105
    %v2192 = vpop.f32.mrf.mxu0
    %v2193 = vadd.f32 %v2180, %v2192
    %v2194 = vpop.f32.mrf.mxu0
    %2195 = vdwg.mxu0
    %2196 = vmatpush.bf16.msra.mxu0 %v1369
    %2197 = vmatpush.bf16.msra.mxu0 %v1365
    %2198 = vmatpush.bf16.msra.mxu0 %v1361
    %2199 = vmatpush.bf16.msra.mxu0 %v1357
    %2200 = vmatpush.bf16.msra.mxu0 %v1353
    %2201 = vmatpush.bf16.msra.mxu0 %v1349
    %2202 = vmatpush.bf16.msra.mxu0 %v1345
    %2203 = vmatpush.bf16.msra.mxu0 %v1341
    %2204 = vmatmul.bf16.gmra.mxu0 %v106
    %v2205 = vpop.f32.mrf.mxu0
    %v2206 = vadd.f32 %v2193, %v2205
    %v2207 = vpop.f32.mrf.mxu0
    %2208 = vdwg.mxu0
    %2209 = vmatpush.bf16.msra.mxu0 %v1401
    %2210 = vmatpush.bf16.msra.mxu0 %v1397
    %2211 = vmatpush.bf16.msra.mxu0 %v1393
    %2212 = vmatpush.bf16.msra.mxu0 %v1389
    %2213 = vmatpush.bf16.msra.mxu0 %v1385
    %2214 = vmatpush.bf16.msra.mxu0 %v1381
    %2215 = vmatpush.bf16.msra.mxu0 %v1377
    %2216 = vmatpush.bf16.msra.mxu0 %v1373
    %2217 = vmatmul.bf16.gmra.mxu0 %v107
    %v2218 = vpop.f32.mrf.mxu0
    %v2219 = vadd.f32 %v2206, %v2218
    %v2220 = vpop.f32.mrf.mxu0
    %2221 = vdwg.mxu0
    %2222 = vmatpush.bf16.msra.mxu0 %v1433
    %2223 = vmatpush.bf16.msra.mxu0 %v1429
    %2224 = vmatpush.bf16.msra.mxu0 %v1425
    %2225 = vmatpush.bf16.msra.mxu0 %v1421
    %2226 = vmatpush.bf16.msra.mxu0 %v1417
    %2227 = vmatpush.bf16.msra.mxu0 %v1413
    %2228 = vmatpush.bf16.msra.mxu0 %v1409
    %2229 = vmatpush.bf16.msra.mxu0 %v1405
    %2230 = vmatmul.bf16.gmra.mxu0 %v108
    %v2231 = vpop.f32.mrf.mxu0
    %v2232 = vadd.f32 %v2219, %v2231
    %v2233 = vpop.f32.mrf.mxu0
    %2234 = vdwg.mxu0
    %2235 = vmatpush.bf16.msra.mxu0 %v1465
    %2236 = vmatpush.bf16.msra.mxu0 %v1461
    %2237 = vmatpush.bf16.msra.mxu0 %v1457
    %2238 = vmatpush.bf16.msra.mxu0 %v1453
    %2239 = vmatpush.bf16.msra.mxu0 %v1449
    %2240 = vmatpush.bf16.msra.mxu0 %v1445
    %2241 = vmatpush.bf16.msra.mxu0 %v1441
    %2242 = vmatpush.bf16.msra.mxu0 %v1437
    %2243 = vmatmul.bf16.gmra.mxu0 %v109
    %v2244 = vpop.f32.mrf.mxu0
    %v2245 = vadd.f32 %v2232, %v2244
    %v2246 = vpop.f32.mrf.mxu0
    %2247 = vdwg.mxu0
    %2248 = vmatpush.bf16.msra.mxu0 %v1497
    %2249 = vmatpush.bf16.msra.mxu0 %v1493
    %2250 = vmatpush.bf16.msra.mxu0 %v1489
    %2251 = vmatpush.bf16.msra.mxu0 %v1485
    %2252 = vmatpush.bf16.msra.mxu0 %v1481
    %2253 = vmatpush.bf16.msra.mxu0 %v1477
    %2254 = vmatpush.bf16.msra.mxu0 %v1473
    %2255 = vmatpush.bf16.msra.mxu0 %v1469
    %2256 = vmatmul.bf16.gmra.mxu0 %v110
    %v2257 = vpop.f32.mrf.mxu0
    %v2258 = vadd.f32 %v2245, %v2257
    %v2259 = vpop.f32.mrf.mxu0
    %2260 = vdwg.mxu0
    %2261 = vmatpush.bf16.msra.mxu0 0
    %2262 = vmatpush.bf16.msra.mxu0 0
    %2263 = vmatpush.bf16.msra.mxu0 %v1521
    %2264 = vmatpush.bf16.msra.mxu0 %v1517
    %2265 = vmatpush.bf16.msra.mxu0 %v1513
    %2266 = vmatpush.bf16.msra.mxu0 %v1509
    %2267 = vmatpush.bf16.msra.mxu0 %v1505
    %2268 = vmatpush.bf16.msra.mxu0 %v1501
    %2269 = vmatmul.bf16.gmra.mxu0 %v1804
    %v2270 = vpop.f32.mrf.mxu0
    %v2271 = vadd.f32 %v2258, %v2270
    %v2272 = vpop.f32.mrf.mxu0
    %2273 = vdwg.mxu0
    %v2274 = vmax.f32 %v1920, 0.0
    %v2275 = vmax.f32 %v2037, 0.0
    %v2276 = vmax.f32 %v2154, 0.0
    %v2277 = vmax.f32 %v2271, 0.0
    %v2278 = vpack.c.bf16 %v2274, %v2274
    %v2279 = vpack.c.bf16 %v2275, %v2275
    %v2280 = vpack.c.bf16 %v2276, %v2276
    %v2281 = vpack.c.bf16 %v2277, %v2277
    %v2282 = vld [vmem:[#allocation8] sm:$0xf]
    %v2283 = vld [vmem:[#allocation8 + $0x4] sm:$0xf]
    %v2284 = vld [vmem:[#allocation8 + $0x8] sm:$0xf]
    %v2285 = vld [vmem:[#allocation8 + $0xc] sm:$0xf]
    %v2286 = vld [vmem:[#allocation8 + $0x10] sm:$0xf]
    %v2287 = vld [vmem:[#allocation8 + $0x14] sm:$0xf]
    %v2288 = vld [vmem:[#allocation8 + $0x18] sm:$0xf]
    %v2289 = vld [vmem:[#allocation8 + $0x1c] sm:$0xf]
    %v2290 = vld [vmem:[#allocation8 + $0x20] sm:$0xf]
    %v2291 = vld [vmem:[#allocation8 + $0x24] sm:$0xf]
    %v2292 = vld [vmem:[#allocation8 + $0x28] sm:$0xf]
    %v2293 = vld [vmem:[#allocation8 + $0x2c] sm:$0xf]
    %v2294 = vld [vmem:[#allocation8 + $0x30] sm:$0xf]
    %v2295 = vld [vmem:[#allocation8 + $0x34] sm:$0xf]
    %v2296 = vld [vmem:[#allocation8 + $0x38] sm:$0xf]
    %v2297 = vld [vmem:[#allocation8 + $0x3c] sm:$0xf]
    %v2298 = vld [vmem:[#allocation8 + $0x40] sm:$0xf]
    %v2299 = vld [vmem:[#allocation8 + $0x44] sm:$0xf]
    %v2300 = vld [vmem:[#allocation8 + $0x48] sm:$0xf]
    %v2301 = vld [vmem:[#allocation8 + $0x4c] sm:$0xf]
    %v2302 = vld [vmem:[#allocation8 + $0x50] sm:$0xf]
    %v2303 = vld [vmem:[#allocation8 + $0x54] sm:$0xf]
    %v2304 = vld [vmem:[#allocation8 + $0x58] sm:$0xf]
    %v2305 = vld [vmem:[#allocation8 + $0x5c] sm:$0xf]
    %v2306 = vld [vmem:[#allocation8 + $0x60] sm:$0xf]
    %v2307 = vld [vmem:[#allocation8 + $0x64] sm:$0xf]
    %v2308 = vld [vmem:[#allocation8 + $0x68] sm:$0xf]
    %v2309 = vld [vmem:[#allocation8 + $0x6c] sm:$0xf]
    %v2310 = vld [vmem:[#allocation8 + $0x70] sm:$0xf]
    %v2311 = vld [vmem:[#allocation8 + $0x74] sm:$0xf]
    %v2312 = vld [vmem:[#allocation8 + $0x78] sm:$0xf]
    %v2313 = vld [vmem:[#allocation8 + $0x7c] sm:$0xf]
    %v2314 = vld [vmem:[#allocation8 + $0x80] sm:$0xf]
    %v2315 = vld [vmem:[#allocation8 + $0x84] sm:$0xf]
    %v2316 = vld [vmem:[#allocation8 + $0x88] sm:$0xf]
    %v2317 = vld [vmem:[#allocation8 + $0x8c] sm:$0xf]
    %v2318 = vld [vmem:[#allocation8 + $0x90] sm:$0xf]
    %v2319 = vld [vmem:[#allocation8 + $0x94] sm:$0xf]
    %v2320 = vld [vmem:[#allocation8 + $0x98] sm:$0xf]
    %v2321 = vld [vmem:[#allocation8 + $0x9c] sm:$0xf]
    %v2322 = vld [vmem:[#allocation8 + $0xa0] sm:$0xf]
    %v2323 = vld [vmem:[#allocation8 + $0xa4] sm:$0xf]
    %v2324 = vld [vmem:[#allocation8 + $0xa8] sm:$0xf]
    %v2325 = vld [vmem:[#allocation8 + $0xac] sm:$0xf]
    %v2326 = vld [vmem:[#allocation8 + $0xb0] sm:$0xf]
    %v2327 = vld [vmem:[#allocation8 + $0xb4] sm:$0xf]
    %v2328 = vld [vmem:[#allocation8 + $0xb8] sm:$0xf]
    %v2329 = vld [vmem:[#allocation8 + $0xbc] sm:$0xf]
    %v2330 = vld [vmem:[#allocation8 + $0xc0] sm:$0xf]
    %v2331 = vld [vmem:[#allocation8 + $0xc4] sm:$0xf]
    %v2332 = vld [vmem:[#allocation8 + $0xc8] sm:$0xf]
    %v2333 = vld [vmem:[#allocation8 + $0xcc] sm:$0xf]
    %v2334 = vld [vmem:[#allocation8 + $0xd0] sm:$0xf]
    %v2335 = vld [vmem:[#allocation8 + $0xd4] sm:$0xf]
    %v2336 = vld [vmem:[#allocation8 + $0xd8] sm:$0xf]
    %v2337 = vld [vmem:[#allocation8 + $0xdc] sm:$0xf]
    %v2338 = vld [vmem:[#allocation8 + $0xe0] sm:$0xf]
    %v2339 = vld [vmem:[#allocation8 + $0xe4] sm:$0xf]
    %v2340 = vld [vmem:[#allocation8 + $0xe8] sm:$0xf]
    %v2341 = vld [vmem:[#allocation8 + $0xec] sm:$0xf]
    %v2342 = vld [vmem:[#allocation8 + $0xf0] sm:$0xf]
    %v2343 = vld [vmem:[#allocation8 + $0xf4] sm:$0xf]
    %v2344 = vld [vmem:[#allocation8 + $0xf8] sm:$0xf]
    %v2345 = vld [vmem:[#allocation8 + $0xfc] sm:$0xf]
    %v2346 = vld [vmem:[#allocation10] sm:$0x1]
    %v2348 = vperm.slane %v2346, 0
    %v2414 = vunpack.c.l.b16 %v2282
    %v2415 = vunpack.c.l.b16 %v2283
    %v2416 = vunpack.c.l.b16 %v2284
    %v2417 = vunpack.c.l.b16 %v2285
    %v2418 = vunpack.c.l.b16 %v2286
    %v2419 = vunpack.c.l.b16 %v2287
    %v2420 = vunpack.c.l.b16 %v2288
    %v2421 = vunpack.c.l.b16 %v2289
    %v2422 = vunpack.c.l.b16 %v2290
    %v2423 = vunpack.c.l.b16 %v2291
    %v2424 = vunpack.c.l.b16 %v2292
    %v2425 = vunpack.c.l.b16 %v2293
    %v2426 = vunpack.c.l.b16 %v2294
    %v2427 = vunpack.c.l.b16 %v2295
    %v2428 = vunpack.c.l.b16 %v2296
    %v2429 = vunpack.c.l.b16 %v2297
    %v2430 = vunpack.c.l.b16 %v2298
    %v2431 = vunpack.c.l.b16 %v2299
    %v2432 = vunpack.c.l.b16 %v2300
    %v2433 = vunpack.c.l.b16 %v2301
    %v2434 = vunpack.c.l.b16 %v2302
    %v2435 = vunpack.c.l.b16 %v2303
    %v2436 = vunpack.c.l.b16 %v2304
    %v2437 = vunpack.c.l.b16 %v2305
    %v2438 = vunpack.c.l.b16 %v2306
    %v2439 = vunpack.c.l.b16 %v2307
    %v2440 = vunpack.c.l.b16 %v2308
    %v2441 = vunpack.c.l.b16 %v2309
    %v2442 = vunpack.c.l.b16 %v2310
    %v2443 = vunpack.c.l.b16 %v2311
    %v2444 = vunpack.c.l.b16 %v2312
    %v2445 = vunpack.c.l.b16 %v2313
    %v2446 = vunpack.c.l.b16 %v2314
    %v2447 = vunpack.c.l.b16 %v2315
    %v2448 = vunpack.c.l.b16 %v2316
    %v2449 = vunpack.c.l.b16 %v2317
    %v2450 = vunpack.c.l.b16 %v2318
    %v2451 = vunpack.c.l.b16 %v2319
    %v2452 = vunpack.c.l.b16 %v2320
    %v2453 = vunpack.c.l.b16 %v2321
    %v2454 = vunpack.c.l.b16 %v2322
    %v2455 = vunpack.c.l.b16 %v2323
    %v2456 = vunpack.c.l.b16 %v2324
    %v2457 = vunpack.c.l.b16 %v2325
    %v2458 = vunpack.c.l.b16 %v2326
    %v2459 = vunpack.c.l.b16 %v2327
    %v2460 = vunpack.c.l.b16 %v2328
    %v2461 = vunpack.c.l.b16 %v2329
    %v2462 = vunpack.c.l.b16 %v2330
    %v2463 = vunpack.c.l.b16 %v2331
    %v2464 = vunpack.c.l.b16 %v2332
    %v2465 = vunpack.c.l.b16 %v2333
    %v2466 = vunpack.c.l.b16 %v2334
    %v2467 = vunpack.c.l.b16 %v2335
    %v2468 = vunpack.c.l.b16 %v2336
    %v2469 = vunpack.c.l.b16 %v2337
    %v2470 = vunpack.c.l.b16 %v2338
    %v2471 = vunpack.c.l.b16 %v2339
    %v2472 = vunpack.c.l.b16 %v2340
    %v2473 = vunpack.c.l.b16 %v2341
    %v2474 = vunpack.c.l.b16 %v2342
    %v2475 = vunpack.c.l.b16 %v2343
    %v2476 = vunpack.c.l.b16 %v2344
    %v2477 = vunpack.c.l.b16 %v2345
    %v2478 = vpack.c.b16 %v2415, %v2414
    %v2479 = vpack.c.b16 %v2417, %v2416
    %v2480 = vpack.c.b16 %v2419, %v2418
    %v2481 = vpack.c.b16 %v2421, %v2420
    %v2482 = vpack.c.b16 %v2423, %v2422
    %v2483 = vpack.c.b16 %v2425, %v2424
    %v2484 = vpack.c.b16 %v2427, %v2426
    %v2485 = vpack.c.b16 %v2429, %v2428
    %v2486 = vpack.c.b16 %v2431, %v2430
    %v2487 = vpack.c.b16 %v2433, %v2432
    %v2488 = vpack.c.b16 %v2435, %v2434
    %v2489 = vpack.c.b16 %v2437, %v2436
    %v2490 = vpack.c.b16 %v2439, %v2438
    %v2491 = vpack.c.b16 %v2441, %v2440
    %v2492 = vpack.c.b16 %v2443, %v2442
    %v2493 = vpack.c.b16 %v2445, %v2444
    %v2494 = vpack.c.b16 %v2447, %v2446
    %v2495 = vpack.c.b16 %v2449, %v2448
    %v2496 = vpack.c.b16 %v2451, %v2450
    %v2497 = vpack.c.b16 %v2453, %v2452
    %v2498 = vpack.c.b16 %v2455, %v2454
    %v2499 = vpack.c.b16 %v2457, %v2456
    %v2500 = vpack.c.b16 %v2459, %v2458
    %v2501 = vpack.c.b16 %v2461, %v2460
    %v2502 = vpack.c.b16 %v2463, %v2462
    %v2503 = vpack.c.b16 %v2465, %v2464
    %v2504 = vpack.c.b16 %v2467, %v2466
    %v2505 = vpack.c.b16 %v2469, %v2468
    %v2506 = vpack.c.b16 %v2471, %v2470
    %v2507 = vpack.c.b16 %v2473, %v2472
    %v2508 = vpack.c.b16 %v2475, %v2474
    %v2509 = vpack.c.b16 %v2477, %v2476
    %2542 = vmatpush.bf16.msra.mxu0 %v2485
    %2543 = vmatpush.bf16.msra.mxu0 %v2484
    %2544 = vmatpush.bf16.msra.mxu0 %v2483
    %2545 = vmatpush.bf16.msra.mxu0 %v2482
    %2546 = vmatpush.bf16.msra.mxu0 %v2481
    %2547 = vmatpush.bf16.msra.mxu0 %v2480
    %2548 = vmatpush.bf16.msra.mxu0 %v2479
    %2549 = vmatpush.bf16.msra.mxu0 %v2478
    %2550 = vmatmul.bf16.gmra.mxu0 %v2278
    %v2551 = vpop.f32.mrf.mxu0
    %v2552 = vadd.f32 %v2348, %v2551
    %v2553 = vpop.f32.mrf.mxu0
    %2554 = vdwg.mxu0
    %2555 = vmatpush.bf16.msra.mxu0 %v2493
    %2556 = vmatpush.bf16.msra.mxu0 %v2492
    %2557 = vmatpush.bf16.msra.mxu0 %v2491
    %2558 = vmatpush.bf16.msra.mxu0 %v2490
    %2559 = vmatpush.bf16.msra.mxu0 %v2489
    %2560 = vmatpush.bf16.msra.mxu0 %v2488
    %2561 = vmatpush.bf16.msra.mxu0 %v2487
    %2562 = vmatpush.bf16.msra.mxu0 %v2486
    %2563 = vmatmul.bf16.gmra.mxu0 %v2279
    %v2564 = vpop.f32.mrf.mxu0
    %v2565 = vadd.f32 %v2552, %v2564
    %v2566 = vpop.f32.mrf.mxu0
    %2567 = vdwg.mxu0
    %2568 = vmatpush.bf16.msra.mxu0 %v2501
    %2569 = vmatpush.bf16.msra.mxu0 %v2500
    %2570 = vmatpush.bf16.msra.mxu0 %v2499
    %2571 = vmatpush.bf16.msra.mxu0 %v2498
    %2572 = vmatpush.bf16.msra.mxu0 %v2497
    %2573 = vmatpush.bf16.msra.mxu0 %v2496
    %2574 = vmatpush.bf16.msra.mxu0 %v2495
    %2575 = vmatpush.bf16.msra.mxu0 %v2494
    %2576 = vmatmul.bf16.gmra.mxu0 %v2280
    %v2577 = vpop.f32.mrf.mxu0
    %v2578 = vadd.f32 %v2565, %v2577
    %v2579 = vpop.f32.mrf.mxu0
    %2580 = vdwg.mxu0
    %2581 = vmatpush.bf16.msra.mxu0 %v2509
    %2582 = vmatpush.bf16.msra.mxu0 %v2508
    %2583 = vmatpush.bf16.msra.mxu0 %v2507
    %2584 = vmatpush.bf16.msra.mxu0 %v2506
    %2585 = vmatpush.bf16.msra.mxu0 %v2505
    %2586 = vmatpush.bf16.msra.mxu0 %v2504
    %2587 = vmatpush.bf16.msra.mxu0 %v2503
    %2588 = vmatpush.bf16.msra.mxu0 %v2502
    %2589 = vmatmul.bf16.gmra.mxu0 %v2281
    %v2590 = vpop.f32.mrf.mxu0
    %v2591 = vadd.f32 %v2578, %v2590
    %v2592 = vpop.f32.mrf.mxu0
    %2593 = vdwg.mxu0
    %2594 = vst [vmem:[#allocation11] sm:$0xff] %v2591
    // Predicated region
    $region42: #{relation_pred_forward.1} parent=1 // pred_check
      _
    $region43: #{relation_pred_forward.1} parent=1 // pred_check_branch
      %2596 = sbr.rel (0) target = $region45
    $region44: #{relation_pred_forward.1} parent=1 // pred_region
      %2598 = vsyncadd [#allocation4], 0
      %s2600 = sshll.u32 [#allocation11], 4
      %s2601 = int_to_ptr.vmem [resolvable:$true] %s2600
      %s2602 = sshll.u32 %s5, 4
      %s2603 = int_to_ptr.hbm [resolvable:$true] %s2602
      %2605 = dma.vmem_to_hbm [thread:$0]  %s2601, 128, %s2603, [#allocation4]
    $region45: #{relation_pred_forward.1} parent=1 // pred_fallthru
      _
    // Predicated region
    $region46: #{relation_pred_forward.1} parent=1 // pred_check
      _
    $region47: #{relation_pred_forward.1} parent=1 // pred_check_branch
      %2607 = sbr.rel (0) target = $region49
    $region48: #{relation_pred_forward.1} parent=1 // pred_region
      %2609 = dma.done [#allocation4], 128
    $region49: #{relation_pred_forward.1} parent=1 // pred_fallthru
      _
    %2610 = vsyncpa [#allocation3], 1
    %2611 = vsyncpa [#allocation6], 1
    %2612 = vsyncpa [#allocation9], 1
    %2613 = vsyncpa [#allocation4], 1

</llo_original>
